<compile_context>
chip_gen: v5e
topology: v5e:2x2
jax: 0.10.0
libtpu: 0.0.40
codegen_flags: <defaults>
</compile_context>

<pallas_src>
import functools

import numpy as np
import jax
import jax.numpy as jnp
from jax.experimental import pallas as pl
from jax.experimental.pallas import tpu as pltpu


# ---------------------------------------------------------------------------
# Pooling-matrix construction (host side, cached across calls).
# ---------------------------------------------------------------------------
def _pool_matrix(in_size: int, out_size: int) -> np.ndarray:
    """(out_size, in_size) averaging matrix matching torch adaptive_avg_pool."""
    m = np.zeros((out_size, in_size), dtype=np.float64)
    for i in range(out_size):
        s = (i * in_size) // out_size                    # floor
        e = -((-(i + 1) * in_size) // out_size)          # ceil
        m[i, s:e] = 1.0 / float(e - s)
    return m


@functools.lru_cache(maxsize=None)
def _kron_pool_matrix(H: int, W: int, Ho: int, Wo: int, dtype_name: str):
    """(H*W, Ho*Wo) matrix s.t. x.reshape(C, H*W) @ Q == adaptive pool (flat).

    Cached so the numpy einsum + host->HBM upload happen once per unique
    (H, W, Ho, Wo, dtype), not once per forward call.  Under jax.jit the
    cached device array additionally constant-folds into the executable.
    """
    ph = _pool_matrix(H, Ho)                             # (Ho, H)
    pw = _pool_matrix(W, Wo)                             # (Wo, W)
    q = np.einsum('ih,jw->hwij', ph, pw).reshape(H * W, Ho * Wo)
    return jnp.asarray(q, dtype=jnp.dtype(dtype_name))


# ---------------------------------------------------------------------------
# Kernel
# ---------------------------------------------------------------------------
def _pyramid_pool_kernel(*refs, c_sizes, batch_tile):
    """refs = (x_0..x_{n-1}, q_0..q_{n-1}, out).

    x_l : (Bt, C_l, H_l*W_l)   q_l : (H_l*W_l, Ho*Wo)   out : (Bt, sum_C, Ho*Wo)
    """
    n = len(c_sizes)
    x_refs = refs[:n]
    q_refs = refs[n:2 * n]
    o_ref = refs[2 * n]

    c_off = 0
    for lvl in range(n):
        q = q_refs[lvl][...]                             # loaded once per level
        for t in range(batch_tile):
            x = x_refs[lvl][t]                           # (C_l, HW_l)
            # One plain 2-D MXU matmul contracts the whole spatial dim;
            # accumulation is f32 regardless of input dtype (no upcast of x).
            y = jnp.dot(x, q, preferred_element_type=jnp.float32)
            # NOTE: if c_off is not a multiple of 8 (sublane tile) this store
            # needs a relayout; align/pad production channel counts if possible.
            o_ref[t, c_off:c_off + c_sizes[lvl], :] = y.astype(o_ref.dtype)
        c_off += c_sizes[lvl]


# ---------------------------------------------------------------------------
# Wrapper
# ---------------------------------------------------------------------------
def _ceil_to(x: int, m: int) -> int:
    return -(-x // m) * m


def _choose_batch_tile(B: int, per_batch_bytes: int,
                       budget_bytes: int = 1 << 20) -> int:
    """Fold several batch elements per grid step when per-batch bytes are tiny.

    Amortizes per-grid-step overhead and small per-level DMAs while keeping
    >= 2 grid steps (when B allows) for pipeline overlap / v7x megacore.
    """
    if B <= 1:
        return 1
    best = 1
    for d in range(1, B + 1):
        if B % d:
            continue
        if B // d < 2:
            break
        if d * per_batch_bytes <= budget_bytes:
            best = d
    return best


def pyramid_pool_agg_pce(inputs, stride: int = 2) -> jnp.ndarray:
    """Forward pass of PyramidPoolAgg_PCE.  `inputs`: list of NCHW arrays."""
    B, _, H_last, W_last = inputs[-1].shape
    Ho = (H_last - 1) // stride + 1
    Wo = (W_last - 1) // stride + 1
    HWo = Ho * Wo
    dtype = inputs[-1].dtype
    itemsize = jnp.dtype(dtype).itemsize

    xs, qs, c_sizes, hw_sizes = [], [], [], []
    for x in inputs:
        b, c, h, w = x.shape
        assert b == B, "all pyramid levels must share the batch size"
        xs.append(x.reshape(B, c, h * w))                # pure row-major view
        # Q kept in the input dtype: HBM bytes are the bottleneck and the
        # accumulation is f32 either way.  (bf16 Q ~0.4% rel. error vs torch's
        # f32 pooling weights; pass f32 Qs if exact parity is required.)
        qs.append(_kron_pool_matrix(h, w, Ho, Wo, jnp.dtype(dtype).name))
        c_sizes.append(c)
        hw_sizes.append(h * w)
    sum_C = sum(c_sizes)

    per_batch_bytes = sum(c * hw for c, hw in zip(c_sizes, hw_sizes)) * itemsize
    bt = _choose_batch_tile(B, per_batch_bytes)
    grid = (B // bt,)

    # ---- VMEM budget: 2x each x block + 1x each Q + 2x out block -----------
    est = 0
    for c, hw in zip(c_sizes, hw_sizes):
        est += 2 * bt * _ceil_to(c, 8) * _ceil_to(hw, 128) * itemsize   # x (dbl buf)
        est += 1 * _ceil_to(hw, 8) * _ceil_to(HWo, 128) * itemsize      # Q (single buf)
    est += 2 * bt * _ceil_to(sum_C, 8) * _ceil_to(HWo, 128) * itemsize  # out (dbl buf)
    try:
        phys_vmem = pltpu.get_tpu_info().vmem_capacity_bytes
    except Exception:
        phys_vmem = 64 << 20                              # v7x-safe fallback
    vmem_limit = int(min(max(2 * est + (1 << 20), 16 << 20),
                         max(phys_vmem - (16 << 20), 16 << 20)))

    # ---- Advisory cost estimate so XLA schedules around the custom call ----
    flops = 2 * B * sum(c * hw * HWo for c, hw in zip(c_sizes, hw_sizes))
    bytes_accessed = (B * sum(c * hw for c, hw in zip(c_sizes, hw_sizes))
                      + sum(hw * HWo for hw in hw_sizes)
                      + B * sum_C * HWo) * itemsize
    cost = pl.CostEstimate(flops=flops, transcendentals=0,
                           bytes_accessed=bytes_accessed)

    kernel = functools.partial(_pyramid_pool_kernel,
                               c_sizes=tuple(c_sizes), batch_tile=bt)

    x_specs = [pl.BlockSpec((bt, c, hw), lambda g: (g, 0, 0))
               for c, hw in zip(c_sizes, hw_sizes)]
    out_spec = pl.BlockSpec((bt, sum_C, HWo), lambda g: (g, 0, 0))

    def build(single_buffer_q: bool):
        q_specs = []
        for hw in hw_sizes:
            kwargs = ({"pipeline_mode": pl.Buffered(buffer_count=1)}
                      if single_buffer_q else {})
            # Constant index_map: Q is fetched once and stays VMEM-resident.
            q_specs.append(pl.BlockSpec((hw, HWo), lambda g: (0, 0), **kwargs))
        return pl.pallas_call(
            kernel,
            out_shape=jax.ShapeDtypeStruct((B, sum_C, HWo), dtype),
            grid=grid,
            in_specs=x_specs + q_specs,
            out_specs=out_spec,
            compiler_params=pltpu.CompilerParams(
                dimension_semantics=("parallel",),
                vmem_limit_bytes=vmem_limit),
            cost_estimate=cost,
        )

    try:
        # Grid-invariant Qs single-buffered: halves their lane-padded VMEM.
        out = build(single_buffer_q=True)(*xs, *qs)
    except Exception:
        # Fallback for Pallas versions without pipeline_mode=Buffered(1).
        out = build(single_buffer_q=False)(*xs, *qs)

    # TODO(synk): for production-sized top levels (H*W in the thousands, B==1),
    # switch that level to separable Pw-then-Ph pooling (kills the HW*HoWo
    # Kronecker Q's HBM/padded-VMEM cost) and add an inner channel-tile grid
    # axis so the DMA of chunk i+1 overlaps the matmul on chunk i.

    # Layout plumbing back to NCHW (pure view).
    return out.reshape(B, sum_C, Ho, Wo)


# ---------------------------------------------------------------------------
# Reference + demo
# ---------------------------------------------------------------------------
def _ref_adaptive_pool_np(x: np.ndarray, Ho: int, Wo: int) -> np.ndarray:
    """Direct numpy reference of torch adaptive_avg_pool2d."""
    B, C, H, W = x.shape
    out = np.zeros((B, C, Ho, Wo), dtype=np.float64)
    for i in range(Ho):
        hs = (i * H) // Ho
        he = -((-(i + 1) * H) // Ho)
        for j in range(Wo):
            ws = (j * W) // Wo
            we = -((-(j + 1) * W) // Wo)
            out[:, :, i, j] = x[:, :, hs:he, ws:we].mean(axis=(2, 3))
    return out.astype(np.float32)


if __name__ == "__main__":
    key = jax.random.PRNGKey(0)
    stride = 2
    # Pyramid of feature maps (last level decides output spatial size):
    # 7 -> Ho = (7 - 1) // 2 + 1 = 4.  B = 4 so the batch-fold path
    # (batch_tile = 2, grid = (2,)) is exercised.
    shapes = [(4, 4, 16, 16), (4, 8, 8, 8), (4, 16, 7, 7)]
    keys = jax.random.split(key, len(shapes))
    inputs = [jax.random.normal(k, s, dtype=jnp.float32)
              for k, s in zip(keys, shapes)]

    out = pyramid_pool_agg_pce(inputs, stride=stride)
    out = jax.block_until_ready(out)

    # Verify against a plain numpy reference of the PyTorch semantics.
    B, C, H, W = shapes[-1]
    Ho = (H - 1) // stride + 1
    Wo = (W - 1) // stride + 1
    ref = np.concatenate(
        [_ref_adaptive_pool_np(np.asarray(x), Ho, Wo) for x in inputs], axis=1)
    np.testing.assert_allclose(np.asarray(out), ref, rtol=1e-5, atol=1e-5)
    assert out.shape == (4, 4 + 8 + 16, Ho, Wo)

    # Second call: pooling matrices come from the lru_cache (no re-upload).
    out2 = jax.block_until_ready(pyramid_pool_agg_pce(inputs, stride=stride))
    np.testing.assert_allclose(np.asarray(out2), ref, rtol=1e-5, atol=1e-5)

    print("KERNEL_OK")
</pallas_src>

<mosaic_0001>
module attributes {stable_mosaic.version = 11 : i64} {
  func.func @_pyramid_pool_kernel(%arg0: i32, %arg1: memref<2x4x256xf32, #tpu.memory_space<vmem>>, %arg2: memref<2x8x64xf32, #tpu.memory_space<vmem>>, %arg3: memref<2x16x49xf32, #tpu.memory_space<vmem>>, %arg4: memref<256x16xf32, #tpu.memory_space<vmem>>, %arg5: memref<64x16xf32, #tpu.memory_space<vmem>>, %arg6: memref<49x16xf32, #tpu.memory_space<vmem>>, %arg7: memref<2x28x16xf32, #tpu.memory_space<vmem>>) attributes {dimension_semantics = [#tpu.dimension_semantics<parallel>], iteration_bounds = array<i64: 2>, scalar_prefetch = 0 : i64, scratch_operands = 0 : i64, tpu.core_type = #tpu.core_type<tc>, window_params = [{transform_indices = @transform_0, window_bounds = array<i64: 2, 4, 256>}, {transform_indices = @transform_1, window_bounds = array<i64: 2, 8, 64>}, {transform_indices = @transform_2, window_bounds = array<i64: 2, 16, 49>}, {pipeline_mode = #tpu.pipeline_mode<synchronous>, transform_indices = @transform_3, window_bounds = array<i64: 256, 16>}, {pipeline_mode = #tpu.pipeline_mode<synchronous>, transform_indices = @transform_4, window_bounds = array<i64: 64, 16>}, {pipeline_mode = #tpu.pipeline_mode<synchronous>, transform_indices = @transform_5, window_bounds = array<i64: 49, 16>}, {transform_indices = @transform_6, window_bounds = array<i64: 2, 28, 16>}]} {
    %c0 = arith.constant 0 : index
    %c0_0 = arith.constant 0 : index
    %0 = vector.load %arg4[%c0, %c0_0] : memref<256x16xf32, #tpu.memory_space<vmem>>, vector<256x16xf32>
    %c0_1 = arith.constant 0 : index
    %c0_2 = arith.constant 0 : index
    %c0_3 = arith.constant 0 : index
    %1 = vector.load %arg1[%c0_1, %c0_2, %c0_3] : memref<2x4x256xf32, #tpu.memory_space<vmem>>, vector<1x4x256xf32>
    %2 = vector.shape_cast %1 : vector<1x4x256xf32> to vector<4x256xf32>
    %cst = arith.constant dense<0.000000e+00> : vector<4x16xf32>
    %3 = tpu.matmul %2, %0, %cst {dimension_numbers = #tpu.dot_dimension_numbers<[1], [0], [0], [1], [0, 0, 1, 1], [], []>} : vector<4x256xf32>, vector<256x16xf32>, vector<4x16xf32> -> vector<4x16xf32>
    %c0_4 = arith.constant 0 : index
    %c0_5 = arith.constant 0 : index
    %c0_6 = arith.constant 0 : index
    %4 = vector.load %arg7[%c0_4, %c0_5, %c0_6] : memref<2x28x16xf32, #tpu.memory_space<vmem>>, vector<1x4x16xf32>
    %5 = vector.shape_cast %4 : vector<1x4x16xf32> to vector<4x16xf32>
    %6 = vector.shape_cast %3 : vector<4x16xf32> to vector<1x4x16xf32>
    tpu.vector_store %arg7[%c0_4, %c0_5, %c0_6], %6 {strides = array<i32>} : memref<2x28x16xf32, #tpu.memory_space<vmem>>, vector<1x4x16xf32>,
    %c1 = arith.constant 1 : index
    %c0_7 = arith.constant 0 : index
    %c0_8 = arith.constant 0 : index
    %7 = vector.load %arg1[%c1, %c0_7, %c0_8] : memref<2x4x256xf32, #tpu.memory_space<vmem>>, vector<1x4x256xf32>
    %8 = vector.shape_cast %7 : vector<1x4x256xf32> to vector<4x256xf32>
    %cst_9 = arith.constant dense<0.000000e+00> : vector<4x16xf32>
    %9 = tpu.matmul %8, %0, %cst_9 {dimension_numbers = #tpu.dot_dimension_numbers<[1], [0], [0], [1], [0, 0, 1, 1], [], []>} : vector<4x256xf32>, vector<256x16xf32>, vector<4x16xf32> -> vector<4x16xf32>
    %c1_10 = arith.constant 1 : index
    %c0_11 = arith.constant 0 : index
    %c0_12 = arith.constant 0 : index
    %10 = vector.load %arg7[%c1_10, %c0_11, %c0_12] : memref<2x28x16xf32, #tpu.memory_space<vmem>>, vector<1x4x16xf32>
    %11 = vector.shape_cast %10 : vector<1x4x16xf32> to vector<4x16xf32>
    %12 = vector.shape_cast %9 : vector<4x16xf32> to vector<1x4x16xf32>
    tpu.vector_store %arg7[%c1_10, %c0_11, %c0_12], %12 {strides = array<i32>} : memref<2x28x16xf32, #tpu.memory_space<vmem>>, vector<1x4x16xf32>,
    %c0_13 = arith.constant 0 : index
    %c0_14 = arith.constant 0 : index
    %13 = vector.load %arg5[%c0_13, %c0_14] : memref<64x16xf32, #tpu.memory_space<vmem>>, vector<64x16xf32>
    %c0_15 = arith.constant 0 : index
    %c0_16 = arith.constant 0 : index
    %c0_17 = arith.constant 0 : index
    %14 = vector.load %arg2[%c0_15, %c0_16, %c0_17] : memref<2x8x64xf32, #tpu.memory_space<vmem>>, vector<1x8x64xf32>
    %15 = vector.shape_cast %14 : vector<1x8x64xf32> to vector<8x64xf32>
    %cst_18 = arith.constant dense<0.000000e+00> : vector<8x16xf32>
    %16 = tpu.matmul %15, %13, %cst_18 {dimension_numbers = #tpu.dot_dimension_numbers<[1], [0], [0], [1], [0, 0, 1, 1], [], []>} : vector<8x64xf32>, vector<64x16xf32>, vector<8x16xf32> -> vector<8x16xf32>
    %c0_19 = arith.constant 0 : index
    %c4 = arith.constant 4 : index
    %c0_20 = arith.constant 0 : index
    %17 = vector.load %arg7[%c0_19, %c4, %c0_20] : memref<2x28x16xf32, #tpu.memory_space<vmem>>, vector<1x8x16xf32>
    %18 = vector.shape_cast %17 : vector<1x8x16xf32> to vector<8x16xf32>
    %19 = vector.shape_cast %16 : vector<8x16xf32> to vector<1x8x16xf32>
    tpu.vector_store %arg7[%c0_19, %c4, %c0_20], %19 {strides = array<i32>} : memref<2x28x16xf32, #tpu.memory_space<vmem>>, vector<1x8x16xf32>,
    %c1_21 = arith.constant 1 : index
    %c0_22 = arith.constant 0 : index
    %c0_23 = arith.constant 0 : index
    %20 = vector.load %arg2[%c1_21, %c0_22, %c0_23] : memref<2x8x64xf32, #tpu.memory_space<vmem>>, vector<1x8x64xf32>
    %21 = vector.shape_cast %20 : vector<1x8x64xf32> to vector<8x64xf32>
    %cst_24 = arith.constant dense<0.000000e+00> : vector<8x16xf32>
    %22 = tpu.matmul %21, %13, %cst_24 {dimension_numbers = #tpu.dot_dimension_numbers<[1], [0], [0], [1], [0, 0, 1, 1], [], []>} : vector<8x64xf32>, vector<64x16xf32>, vector<8x16xf32> -> vector<8x16xf32>
    %c1_25 = arith.constant 1 : index
    %c4_26 = arith.constant 4 : index
    %c0_27 = arith.constant 0 : index
    %23 = vector.load %arg7[%c1_25, %c4_26, %c0_27] : memref<2x28x16xf32, #tpu.memory_space<vmem>>, vector<1x8x16xf32>
    %24 = vector.shape_cast %23 : vector<1x8x16xf32> to vector<8x16xf32>
    %25 = vector.shape_cast %22 : vector<8x16xf32> to vector<1x8x16xf32>
    tpu.vector_store %arg7[%c1_25, %c4_26, %c0_27], %25 {strides = array<i32>} : memref<2x28x16xf32, #tpu.memory_space<vmem>>, vector<1x8x16xf32>,
    %c0_28 = arith.constant 0 : index
    %c0_29 = arith.constant 0 : index
    %26 = vector.load %arg6[%c0_28, %c0_29] : memref<49x16xf32, #tpu.memory_space<vmem>>, vector<49x16xf32>
    %c0_30 = arith.constant 0 : index
    %c0_31 = arith.constant 0 : index
    %c0_32 = arith.constant 0 : index
    %27 = vector.load %arg3[%c0_30, %c0_31, %c0_32] : memref<2x16x49xf32, #tpu.memory_space<vmem>>, vector<1x16x49xf32>
    %28 = vector.shape_cast %27 : vector<1x16x49xf32> to vector<16x49xf32>
    %cst_33 = arith.constant dense<0.000000e+00> : vector<16x16xf32>
    %29 = tpu.matmul %28, %26, %cst_33 {dimension_numbers = #tpu.dot_dimension_numbers<[1], [0], [0], [1], [0, 0, 1, 1], [], []>} : vector<16x49xf32>, vector<49x16xf32>, vector<16x16xf32> -> vector<16x16xf32>
    %c0_34 = arith.constant 0 : index
    %c12 = arith.constant 12 : index
    %c0_35 = arith.constant 0 : index
    %30 = vector.load %arg7[%c0_34, %c12, %c0_35] : memref<2x28x16xf32, #tpu.memory_space<vmem>>, vector<1x16x16xf32>
    %31 = vector.shape_cast %30 : vector<1x16x16xf32> to vector<16x16xf32>
    %32 = vector.shape_cast %29 : vector<16x16xf32> to vector<1x16x16xf32>
    tpu.vector_store %arg7[%c0_34, %c12, %c0_35], %32 {strides = array<i32>} : memref<2x28x16xf32, #tpu.memory_space<vmem>>, vector<1x16x16xf32>,
    %c1_36 = arith.constant 1 : index
    %c0_37 = arith.constant 0 : index
    %c0_38 = arith.constant 0 : index
    %33 = vector.load %arg3[%c1_36, %c0_37, %c0_38] : memref<2x16x49xf32, #tpu.memory_space<vmem>>, vector<1x16x49xf32>
    %34 = vector.shape_cast %33 : vector<1x16x49xf32> to vector<16x49xf32>
    %cst_39 = arith.constant dense<0.000000e+00> : vector<16x16xf32>
    %35 = tpu.matmul %34, %26, %cst_39 {dimension_numbers = #tpu.dot_dimension_numbers<[1], [0], [0], [1], [0, 0, 1, 1], [], []>} : vector<16x49xf32>, vector<49x16xf32>, vector<16x16xf32> -> vector<16x16xf32>
    %c1_40 = arith.constant 1 : index
    %c12_41 = arith.constant 12 : index
    %c0_42 = arith.constant 0 : index
    %36 = vector.load %arg7[%c1_40, %c12_41, %c0_42] : memref<2x28x16xf32, #tpu.memory_space<vmem>>, vector<1x16x16xf32>
    %37 = vector.shape_cast %36 : vector<1x16x16xf32> to vector<16x16xf32>
    %38 = vector.shape_cast %35 : vector<16x16xf32> to vector<1x16x16xf32>
    tpu.vector_store %arg7[%c1_40, %c12_41, %c0_42], %38 {strides = array<i32>} : memref<2x28x16xf32, #tpu.memory_space<vmem>>, vector<1x16x16xf32>,
    return
  }
  func.func @transform_0(%arg0: i32) -> (i32, i32, i32) {
    %c0_i32 = arith.constant 0 : i32
    %c0_i32_0 = arith.constant 0 : i32
    %c0_i32_1 = arith.constant 0 : i32
    return %arg0, %c0_i32, %c0_i32_0 : i32, i32, i32
  }
  func.func @transform_1(%arg0: i32) -> (i32, i32, i32) {
    %c0_i32 = arith.constant 0 : i32
    %c0_i32_0 = arith.constant 0 : i32
    %c0_i32_1 = arith.constant 0 : i32
    return %arg0, %c0_i32, %c0_i32_0 : i32, i32, i32
  }
  func.func @transform_2(%arg0: i32) -> (i32, i32, i32) {
    %c0_i32 = arith.constant 0 : i32
    %c0_i32_0 = arith.constant 0 : i32
    %c0_i32_1 = arith.constant 0 : i32
    return %arg0, %c0_i32, %c0_i32_0 : i32, i32, i32
  }
  func.func @transform_3(%arg0: i32) -> (i32, i32) {
    %c0_i32 = arith.constant 0 : i32
    %c0_i32_0 = arith.constant 0 : i32
    %c0_i32_1 = arith.constant 0 : i32
    return %c0_i32, %c0_i32_0 : i32, i32
  }
  func.func @transform_4(%arg0: i32) -> (i32, i32) {
    %c0_i32 = arith.constant 0 : i32
    %c0_i32_0 = arith.constant 0 : i32
    %c0_i32_1 = arith.constant 0 : i32
    return %c0_i32, %c0_i32_0 : i32, i32
  }
  func.func @transform_5(%arg0: i32) -> (i32, i32) {
    %c0_i32 = arith.constant 0 : i32
    %c0_i32_0 = arith.constant 0 : i32
    %c0_i32_1 = arith.constant 0 : i32
    return %c0_i32, %c0_i32_0 : i32, i32
  }
  func.func @transform_6(%arg0: i32) -> (i32, i32, i32) {
    %c0_i32 = arith.constant 0 : i32
    %c0_i32_0 = arith.constant 0 : i32
    %c0_i32_1 = arith.constant 0 : i32
    return %arg0, %c0_i32, %c0_i32_0 : i32, i32, i32
  }
}

module attributes {stable_mosaic.version = 11 : i64} {
  func.func @_pyramid_pool_kernel(%arg0: i32, %arg1: memref<2x4x256xf32, #tpu.memory_space<vmem>>, %arg2: memref<2x8x64xf32, #tpu.memory_space<vmem>>, %arg3: memref<2x16x49xf32, #tpu.memory_space<vmem>>, %arg4: memref<256x16xf32, #tpu.memory_space<vmem>>, %arg5: memref<64x16xf32, #tpu.memory_space<vmem>>, %arg6: memref<49x16xf32, #tpu.memory_space<vmem>>, %arg7: memref<2x28x16xf32, #tpu.memory_space<vmem>>) attributes {dimension_semantics = [#tpu.dimension_semantics<parallel>], iteration_bounds = array<i64: 2>, scalar_prefetch = 0 : i64, scratch_operands = 0 : i64, tpu.core_type = #tpu.core_type<tc>, window_params = [{transform_indices = @transform_0, window_bounds = array<i64: 2, 4, 256>}, {transform_indices = @transform_1, window_bounds = array<i64: 2, 8, 64>}, {transform_indices = @transform_2, window_bounds = array<i64: 2, 16, 49>}, {pipeline_mode = #tpu.pipeline_mode<synchronous>, transform_indices = @transform_3, window_bounds = array<i64: 256, 16>}, {pipeline_mode = #tpu.pipeline_mode<synchronous>, transform_indices = @transform_4, window_bounds = array<i64: 64, 16>}, {pipeline_mode = #tpu.pipeline_mode<synchronous>, transform_indices = @transform_5, window_bounds = array<i64: 49, 16>}, {transform_indices = @transform_6, window_bounds = array<i64: 2, 28, 16>}]} {
    %c0 = arith.constant 0 : index
    %c0_0 = arith.constant 0 : index
    %0 = vector.load %arg4[%c0, %c0_0] : memref<256x16xf32, #tpu.memory_space<vmem>>, vector<256x16xf32>
    %c0_1 = arith.constant 0 : index
    %c0_2 = arith.constant 0 : index
    %c0_3 = arith.constant 0 : index
    %1 = vector.load %arg1[%c0_1, %c0_2, %c0_3] : memref<2x4x256xf32, #tpu.memory_space<vmem>>, vector<1x4x256xf32>
    %2 = vector.shape_cast %1 : vector<1x4x256xf32> to vector<4x256xf32>
    %cst = arith.constant dense<0.000000e+00> : vector<4x16xf32>
    %3 = tpu.matmul %2, %0, %cst {dimension_numbers = #tpu.dot_dimension_numbers<[1], [0], [0], [1], [0, 0, 1, 1], [], []>} : vector<4x256xf32>, vector<256x16xf32>, vector<4x16xf32> -> vector<4x16xf32>
    %c0_4 = arith.constant 0 : index
    %c0_5 = arith.constant 0 : index
    %c0_6 = arith.constant 0 : index
    %4 = vector.load %arg7[%c0_4, %c0_5, %c0_6] : memref<2x28x16xf32, #tpu.memory_space<vmem>>, vector<1x4x16xf32>
    %5 = vector.shape_cast %4 : vector<1x4x16xf32> to vector<4x16xf32>
    %6 = vector.shape_cast %3 : vector<4x16xf32> to vector<1x4x16xf32>
    tpu.vector_store %arg7[%c0_4, %c0_5, %c0_6], %6 {strides = array<i32>} : memref<2x28x16xf32, #tpu.memory_space<vmem>>, vector<1x4x16xf32>,
    %c1 = arith.constant 1 : index
    %c0_7 = arith.constant 0 : index
    %c0_8 = arith.constant 0 : index
    %7 = vector.load %arg1[%c1, %c0_7, %c0_8] : memref<2x4x256xf32, #tpu.memory_space<vmem>>, vector<1x4x256xf32>
    %8 = vector.shape_cast %7 : vector<1x4x256xf32> to vector<4x256xf32>
    %cst_9 = arith.constant dense<0.000000e+00> : vector<4x16xf32>
    %9 = tpu.matmul %8, %0, %cst_9 {dimension_numbers = #tpu.dot_dimension_numbers<[1], [0], [0], [1], [0, 0, 1, 1], [], []>} : vector<4x256xf32>, vector<256x16xf32>, vector<4x16xf32> -> vector<4x16xf32>
    %c1_10 = arith.constant 1 : index
    %c0_11 = arith.constant 0 : index
    %c0_12 = arith.constant 0 : index
    %10 = vector.load %arg7[%c1_10, %c0_11, %c0_12] : memref<2x28x16xf32, #tpu.memory_space<vmem>>, vector<1x4x16xf32>
    %11 = vector.shape_cast %10 : vector<1x4x16xf32> to vector<4x16xf32>
    %12 = vector.shape_cast %9 : vector<4x16xf32> to vector<1x4x16xf32>
    tpu.vector_store %arg7[%c1_10, %c0_11, %c0_12], %12 {strides = array<i32>} : memref<2x28x16xf32, #tpu.memory_space<vmem>>, vector<1x4x16xf32>,
    %c0_13 = arith.constant 0 : index
    %c0_14 = arith.constant 0 : index
    %13 = vector.load %arg5[%c0_13, %c0_14] : memref<64x16xf32, #tpu.memory_space<vmem>>, vector<64x16xf32>
    %c0_15 = arith.constant 0 : index
    %c0_16 = arith.constant 0 : index
    %c0_17 = arith.constant 0 : index
    %14 = vector.load %arg2[%c0_15, %c0_16, %c0_17] : memref<2x8x64xf32, #tpu.memory_space<vmem>>, vector<1x8x64xf32>
    %15 = vector.shape_cast %14 : vector<1x8x64xf32> to vector<8x64xf32>
    %cst_18 = arith.constant dense<0.000000e+00> : vector<8x16xf32>
    %16 = tpu.matmul %15, %13, %cst_18 {dimension_numbers = #tpu.dot_dimension_numbers<[1], [0], [0], [1], [0, 0, 1, 1], [], []>} : vector<8x64xf32>, vector<64x16xf32>, vector<8x16xf32> -> vector<8x16xf32>
    %c0_19 = arith.constant 0 : index
    %c4 = arith.constant 4 : index
    %c0_20 = arith.constant 0 : index
    %17 = vector.load %arg7[%c0_19, %c4, %c0_20] : memref<2x28x16xf32, #tpu.memory_space<vmem>>, vector<1x8x16xf32>
    %18 = vector.shape_cast %17 : vector<1x8x16xf32> to vector<8x16xf32>
    %19 = vector.shape_cast %16 : vector<8x16xf32> to vector<1x8x16xf32>
    tpu.vector_store %arg7[%c0_19, %c4, %c0_20], %19 {strides = array<i32>} : memref<2x28x16xf32, #tpu.memory_space<vmem>>, vector<1x8x16xf32>,
    %c1_21 = arith.constant 1 : index
    %c0_22 = arith.constant 0 : index
    %c0_23 = arith.constant 0 : index
    %20 = vector.load %arg2[%c1_21, %c0_22, %c0_23] : memref<2x8x64xf32, #tpu.memory_space<vmem>>, vector<1x8x64xf32>
    %21 = vector.shape_cast %20 : vector<1x8x64xf32> to vector<8x64xf32>
    %cst_24 = arith.constant dense<0.000000e+00> : vector<8x16xf32>
    %22 = tpu.matmul %21, %13, %cst_24 {dimension_numbers = #tpu.dot_dimension_numbers<[1], [0], [0], [1], [0, 0, 1, 1], [], []>} : vector<8x64xf32>, vector<64x16xf32>, vector<8x16xf32> -> vector<8x16xf32>
    %c1_25 = arith.constant 1 : index
    %c4_26 = arith.constant 4 : index
    %c0_27 = arith.constant 0 : index
    %23 = vector.load %arg7[%c1_25, %c4_26, %c0_27] : memref<2x28x16xf32, #tpu.memory_space<vmem>>, vector<1x8x16xf32>
    %24 = vector.shape_cast %23 : vector<1x8x16xf32> to vector<8x16xf32>
    %25 = vector.shape_cast %22 : vector<8x16xf32> to vector<1x8x16xf32>
    tpu.vector_store %arg7[%c1_25, %c4_26, %c0_27], %25 {strides = array<i32>} : memref<2x28x16xf32, #tpu.memory_space<vmem>>, vector<1x8x16xf32>,
    %c0_28 = arith.constant 0 : index
    %c0_29 = arith.constant 0 : index
    %26 = vector.load %arg6[%c0_28, %c0_29] : memref<49x16xf32, #tpu.memory_space<vmem>>, vector<49x16xf32>
    %c0_30 = arith.constant 0 : index
    %c0_31 = arith.constant 0 : index
    %c0_32 = arith.constant 0 : index
    %27 = vector.load %arg3[%c0_30, %c0_31, %c0_32] : memref<2x16x49xf32, #tpu.memory_space<vmem>>, vector<1x16x49xf32>
    %28 = vector.shape_cast %27 : vector<1x16x49xf32> to vector<16x49xf32>
    %cst_33 = arith.constant dense<0.000000e+00> : vector<16x16xf32>
    %29 = tpu.matmul %28, %26, %cst_33 {dimension_numbers = #tpu.dot_dimension_numbers<[1], [0], [0], [1], [0, 0, 1, 1], [], []>} : vector<16x49xf32>, vector<49x16xf32>, vector<16x16xf32> -> vector<16x16xf32>
    %c0_34 = arith.constant 0 : index
    %c12 = arith.constant 12 : index
    %c0_35 = arith.constant 0 : index
    %30 = vector.load %arg7[%c0_34, %c12, %c0_35] : memref<2x28x16xf32, #tpu.memory_space<vmem>>, vector<1x16x16xf32>
    %31 = vector.shape_cast %30 : vector<1x16x16xf32> to vector<16x16xf32>
    %32 = vector.shape_cast %29 : vector<16x16xf32> to vector<1x16x16xf32>
    tpu.vector_store %arg7[%c0_34, %c12, %c0_35], %32 {strides = array<i32>} : memref<2x28x16xf32, #tpu.memory_space<vmem>>, vector<1x16x16xf32>,
    %c1_36 = arith.constant 1 : index
    %c0_37 = arith.constant 0 : index
    %c0_38 = arith.constant 0 : index
    %33 = vector.load %arg3[%c1_36, %c0_37, %c0_38] : memref<2x16x49xf32, #tpu.memory_space<vmem>>, vector<1x16x49xf32>
    %34 = vector.shape_cast %33 : vector<1x16x49xf32> to vector<16x49xf32>
    %cst_39 = arith.constant dense<0.000000e+00> : vector<16x16xf32>
    %35 = tpu.matmul %34, %26, %cst_39 {dimension_numbers = #tpu.dot_dimension_numbers<[1], [0], [0], [1], [0, 0, 1, 1], [], []>} : vector<16x49xf32>, vector<49x16xf32>, vector<16x16xf32> -> vector<16x16xf32>
    %c1_40 = arith.constant 1 : index
    %c12_41 = arith.constant 12 : index
    %c0_42 = arith.constant 0 : index
    %36 = vector.load %arg7[%c1_40, %c12_41, %c0_42] : memref<2x28x16xf32, #tpu.memory_space<vmem>>, vector<1x16x16xf32>
    %37 = vector.shape_cast %36 : vector<1x16x16xf32> to vector<16x16xf32>
    %38 = vector.shape_cast %35 : vector<16x16xf32> to vector<1x16x16xf32>
    tpu.vector_store %arg7[%c1_40, %c12_41, %c0_42], %38 {strides = array<i32>} : memref<2x28x16xf32, #tpu.memory_space<vmem>>, vector<1x16x16xf32>,
    return
  }
  func.func @transform_0(%arg0: i32) -> (i32, i32, i32) {
    %c0_i32 = arith.constant 0 : i32
    %c0_i32_0 = arith.constant 0 : i32
    %c0_i32_1 = arith.constant 0 : i32
    return %arg0, %c0_i32, %c0_i32_0 : i32, i32, i32
  }
  func.func @transform_1(%arg0: i32) -> (i32, i32, i32) {
    %c0_i32 = arith.constant 0 : i32
    %c0_i32_0 = arith.constant 0 : i32
    %c0_i32_1 = arith.constant 0 : i32
    return %arg0, %c0_i32, %c0_i32_0 : i32, i32, i32
  }
  func.func @transform_2(%arg0: i32) -> (i32, i32, i32) {
    %c0_i32 = arith.constant 0 : i32
    %c0_i32_0 = arith.constant 0 : i32
    %c0_i32_1 = arith.constant 0 : i32
    return %arg0, %c0_i32, %c0_i32_0 : i32, i32, i32
  }
  func.func @transform_3(%arg0: i32) -> (i32, i32) {
    %c0_i32 = arith.constant 0 : i32
    %c0_i32_0 = arith.constant 0 : i32
    %c0_i32_1 = arith.constant 0 : i32
    return %c0_i32, %c0_i32_0 : i32, i32
  }
  func.func @transform_4(%arg0: i32) -> (i32, i32) {
    %c0_i32 = arith.constant 0 : i32
    %c0_i32_0 = arith.constant 0 : i32
    %c0_i32_1 = arith.constant 0 : i32
    return %c0_i32, %c0_i32_0 : i32, i32
  }
  func.func @transform_5(%arg0: i32) -> (i32, i32) {
    %c0_i32 = arith.constant 0 : i32
    %c0_i32_0 = arith.constant 0 : i32
    %c0_i32_1 = arith.constant 0 : i32
    return %c0_i32, %c0_i32_0 : i32, i32
  }
  func.func @transform_6(%arg0: i32) -> (i32, i32, i32) {
    %c0_i32 = arith.constant 0 : i32
    %c0_i32_0 = arith.constant 0 : i32
    %c0_i32_1 = arith.constant 0 : i32
    return %arg0, %c0_i32, %c0_i32_0 : i32, i32, i32
  }
}

</mosaic_0001>

<llo_original>
// kernel: tpu_custom_call.1
$region0: #{tpu_custom_call.1}
  #allocation0 [shape = 'u32[]', space=smem, size = 0x4, offset = 0x4, fixed_abs, tag = 'smem constant byte address 0x4 - core index']
  #allocation1 [shape = 'u32[72,128]{1,0:T(1,128)}', space=vmem, size = 0x9000, scoped, tag = 'internal scratch']
  %s0 = inlined_call_operand.vmem [shape: f32[4,4,256], index: 0, kind: input, shape index: {}]
  %s1 = inlined_call_operand.vmem [shape: f32[4,8,64], index: 1, kind: input, shape index: {}]
  %s2 = inlined_call_operand.vmem [shape: f32[4,16,49], index: 2, kind: input, shape index: {}]
  %s3 = inlined_call_operand.vmem [shape: f32[256,16], index: 3, kind: input, shape index: {}]
  %s4 = inlined_call_operand.vmem [shape: f32[64,16], index: 4, kind: input, shape index: {}]
  %s5 = inlined_call_operand.vmem [shape: f32[49,16], index: 5, kind: input, shape index: {}]
  %s6 = inlined_call_operand.vmem [shape: f32[4,28,16], index: 6, kind: output, shape index: {}]
  %s7 = sld [smem:[#allocation0]]
  $region57: #{tpu_custom_call.1} parent=0
    _
  %s9 = ssub.s32 1, %s7
  %s10 = scalar_select 0, %s9, %s7
  loop: start=0, step=1, limit=4
  $region2: #{tpu_custom_call.1} parent=0 // loop_pre_header
    _
  $region3: #{tpu_custom_call.1} parent=0 // loop_header
    %s12 = sphi 0, %s16
    %p13 = scmp.ge.s32.totalorder %s12, 4
    %s22 = sphi 0, %s24
    %s25 = sphi 0, %s22
    %s26 = sphi 0, %s25
    %s42 = sphi 0, %s26
    %s48 = sphi 0, %s50
    %s51 = sphi 0, %s48
    %s52 = sphi 0, %s51
    %s68 = sphi 0, %s52
    %s74 = sphi 0, %s76
    %s77 = sphi 0, %s74
    %s78 = sphi 0, %s77
    %s94 = sphi 0, %s78
    %s98 = sphi 0, %s98
    %s100 = sphi 0, %s98
    %s101 = sphi 0, %s100
    %s115 = sphi 0, %s101
    %s119 = sphi 0, %s119
    %s121 = sphi 0, %s119
    %s122 = sphi 0, %s121
    %s136 = sphi 0, %s122
    %s140 = sphi 0, %s140
    %s142 = sphi 0, %s140
    %s143 = sphi 0, %s142
    %s157 = sphi 0, %s143
    %s163 = sphi 0, %s165
    %s166 = sphi 0, %s163
    %s167 = sphi 0, %s166
    %s183 = sphi 0, %s167
  $region4: #{tpu_custom_call.1} parent=0 // loop_header_branch
    %15 = sbr.rel (%p13) target = $region8
  $region5: #{tpu_custom_call.1} parent=0 // loop_body
    %s17 = ssub.s32 %s12, 1
    %s18 = ssub.s32 %s12, 2
    %s19 = sadd.s32 %s12, 1
    %s20 = ssub.s32 %s12, %s19
    %p21 = scmp.eq.s32.totalorder %s20, 0
    %s23 = sadd.s32 %s22, 1
    %s24 = scalar_select %p21, %s22, %s23
    %p27 = pneg %p21
    %p28 = scmp.eq.s32.totalorder %s12, 1
    %p29 = por %p27, %p28
    %p30 = scmp.ne.s32.totalorder %s22, %s25
    %p31 = scmp.eq.s32.totalorder %s12, 0
    %p32 = por %p30, %p31
    %p33 = scmp.ne.s32.totalorder %s22, %s25
    %p34 = scmp.eq.s32.totalorder %s17, 1
    %p35 = por %p33, %p34
    %p36 = scmp.ne.s32.totalorder %s25, %s26
    %p37 = scmp.eq.s32.totalorder %s17, 0
    %p38 = por %p36, %p37
    %p39 = scmp.ne.s32.totalorder %s25, %s26
    %p40 = scmp.eq.s32.totalorder %s18, 1
    %p41 = por %p39, %p40
    %p43 = scmp.ne.s32.totalorder %s26, %s42
    %p44 = scmp.eq.s32.totalorder %s18, 0
    %p45 = por %p43, %p44
    %s46 = ssub.s32 %s12, %s19
    %p47 = scmp.eq.s32.totalorder %s46, 0
    %s49 = sadd.s32 %s48, 1
    %s50 = scalar_select %p47, %s48, %s49
    %p53 = pneg %p47
    %p54 = scmp.eq.s32.totalorder %s12, 1
    %p55 = por %p53, %p54
    %p56 = scmp.ne.s32.totalorder %s48, %s51
    %p57 = scmp.eq.s32.totalorder %s12, 0
    %p58 = por %p56, %p57
    %p59 = scmp.ne.s32.totalorder %s48, %s51
    %p60 = scmp.eq.s32.totalorder %s17, 1
    %p61 = por %p59, %p60
    %p62 = scmp.ne.s32.totalorder %s51, %s52
    %p63 = scmp.eq.s32.totalorder %s17, 0
    %p64 = por %p62, %p63
    %p65 = scmp.ne.s32.totalorder %s51, %s52
    %p66 = scmp.eq.s32.totalorder %s18, 1
    %p67 = por %p65, %p66
    %p69 = scmp.ne.s32.totalorder %s52, %s68
    %p70 = scmp.eq.s32.totalorder %s18, 0
    %p71 = por %p69, %p70
    %s72 = ssub.s32 %s12, %s19
    %p73 = scmp.eq.s32.totalorder %s72, 0
    %s75 = sadd.s32 %s74, 1
    %s76 = scalar_select %p73, %s74, %s75
    %p79 = pneg %p73
    %p80 = scmp.eq.s32.totalorder %s12, 1
    %p81 = por %p79, %p80
    %p82 = scmp.ne.s32.totalorder %s74, %s77
    %p83 = scmp.eq.s32.totalorder %s12, 0
    %p84 = por %p82, %p83
    %p85 = scmp.ne.s32.totalorder %s74, %s77
    %p86 = scmp.eq.s32.totalorder %s17, 1
    %p87 = por %p85, %p86
    %p88 = scmp.ne.s32.totalorder %s77, %s78
    %p89 = scmp.eq.s32.totalorder %s17, 0
    %p90 = por %p88, %p89
    %p91 = scmp.ne.s32.totalorder %s77, %s78
    %p92 = scmp.eq.s32.totalorder %s18, 1
    %p93 = por %p91, %p92
    %p95 = scmp.ne.s32.totalorder %s78, %s94
    %p96 = scmp.eq.s32.totalorder %s18, 0
    %p97 = por %p95, %p96
    %s99 = sadd.s32 %s98, 1
    %p102 = scmp.eq.s32.totalorder %s12, 1
    %p103 = scmp.ne.s32.totalorder %s98, %s100
    %p104 = scmp.eq.s32.totalorder %s12, 0
    %p105 = por %p103, %p104
    %p106 = scmp.ne.s32.totalorder %s98, %s100
    %p107 = scmp.eq.s32.totalorder %s17, 1
    %p108 = por %p106, %p107
    %p109 = scmp.ne.s32.totalorder %s100, %s101
    %p110 = scmp.eq.s32.totalorder %s17, 0
    %p111 = por %p109, %p110
    %p112 = scmp.ne.s32.totalorder %s100, %s101
    %p113 = scmp.eq.s32.totalorder %s18, 1
    %p114 = por %p112, %p113
    %p116 = scmp.ne.s32.totalorder %s101, %s115
    %p117 = scmp.eq.s32.totalorder %s18, 0
    %p118 = por %p116, %p117
    %s120 = sadd.s32 %s119, 1
    %p123 = scmp.eq.s32.totalorder %s12, 1
    %p124 = scmp.ne.s32.totalorder %s119, %s121
    %p125 = scmp.eq.s32.totalorder %s12, 0
    %p126 = por %p124, %p125
    %p127 = scmp.ne.s32.totalorder %s119, %s121
    %p128 = scmp.eq.s32.totalorder %s17, 1
    %p129 = por %p127, %p128
    %p130 = scmp.ne.s32.totalorder %s121, %s122
    %p131 = scmp.eq.s32.totalorder %s17, 0
    %p132 = por %p130, %p131
    %p133 = scmp.ne.s32.totalorder %s121, %s122
    %p134 = scmp.eq.s32.totalorder %s18, 1
    %p135 = por %p133, %p134
    %p137 = scmp.ne.s32.totalorder %s122, %s136
    %p138 = scmp.eq.s32.totalorder %s18, 0
    %p139 = por %p137, %p138
    %s141 = sadd.s32 %s140, 1
    %p144 = scmp.eq.s32.totalorder %s12, 1
    %p145 = scmp.ne.s32.totalorder %s140, %s142
    %p146 = scmp.eq.s32.totalorder %s12, 0
    %p147 = por %p145, %p146
    %p148 = scmp.ne.s32.totalorder %s140, %s142
    %p149 = scmp.eq.s32.totalorder %s17, 1
    %p150 = por %p148, %p149
    %p151 = scmp.ne.s32.totalorder %s142, %s143
    %p152 = scmp.eq.s32.totalorder %s17, 0
    %p153 = por %p151, %p152
    %p154 = scmp.ne.s32.totalorder %s142, %s143
    %p155 = scmp.eq.s32.totalorder %s18, 1
    %p156 = por %p154, %p155
    %p158 = scmp.ne.s32.totalorder %s143, %s157
    %p159 = scmp.eq.s32.totalorder %s18, 0
    %p160 = por %p158, %p159
    %s161 = ssub.s32 %s12, %s19
    %p162 = scmp.eq.s32.totalorder %s161, 0
    %s164 = sadd.s32 %s163, 1
    %s165 = scalar_select %p162, %s163, %s164
    %p168 = pneg %p162
    %p169 = scmp.eq.s32.totalorder %s12, 1
    %p170 = por %p168, %p169
    %p171 = scmp.ne.s32.totalorder %s163, %s166
    %p172 = scmp.eq.s32.totalorder %s12, 0
    %p173 = por %p171, %p172
    %p174 = scmp.ne.s32.totalorder %s163, %s166
    %p175 = scmp.eq.s32.totalorder %s17, 1
    %p176 = por %p174, %p175
    %p177 = scmp.ne.s32.totalorder %s166, %s167
    %p178 = scmp.eq.s32.totalorder %s17, 0
    %p179 = por %p177, %p178
    %p180 = scmp.ne.s32.totalorder %s166, %s167
    %p181 = scmp.eq.s32.totalorder %s18, 1
    %p182 = por %p180, %p181
    %p184 = scmp.ne.s32.totalorder %s167, %s183
    %p185 = scmp.eq.s32.totalorder %s18, 0
    %p186 = por %p184, %p185
    %p187 = scmp.le.s32.totalorder 1, %s12
    %p188 = scmp.lt.s32.totalorder %s12, 3
    %p189 = pnand %p187, %p188
    %p190 = pneg %p189
    // Predicated region
    $region9: #{tpu_custom_call.1} parent=5 // pred_check
      _
    $region10: #{tpu_custom_call.1} parent=5 // pred_check_branch
      %192 = sbr.rel (%p189) target = $region12
    $region11: #{tpu_custom_call.1} parent=5 // pred_region
      %s193 = ssub.s32 %s12, 1
      // Predicated region
      $region13: #{tpu_custom_call.1} parent=11 // pred_check
        %p194 = pneg %p111
      $region14: #{tpu_custom_call.1} parent=11 // pred_check_branch
        %196 = sbr.rel (%p194) target = $region16
      $region15: #{tpu_custom_call.1} parent=11 // pred_region
        _
      $region16: #{tpu_custom_call.1} parent=11 // pred_fallthru
        _
      // Predicated region
      $region17: #{tpu_custom_call.1} parent=11 // pred_check
        %p197 = pneg %p132
      $region18: #{tpu_custom_call.1} parent=11 // pred_check_branch
        %199 = sbr.rel (%p197) target = $region20
      $region19: #{tpu_custom_call.1} parent=11 // pred_region
        _
      $region20: #{tpu_custom_call.1} parent=11 // pred_fallthru
        _
      // Predicated region
      $region21: #{tpu_custom_call.1} parent=11 // pred_check
        %p200 = pneg %p153
      $region22: #{tpu_custom_call.1} parent=11 // pred_check_branch
        %202 = sbr.rel (%p200) target = $region24
      $region23: #{tpu_custom_call.1} parent=11 // pred_region
        _
      $region24: #{tpu_custom_call.1} parent=11 // pred_fallthru
        _
    $region12: #{tpu_custom_call.1} parent=5 // pred_fallthru
      _
    %p203 = scmp.lt.s32.totalorder %s12, 2
    // Predicated region
    $region25: #{tpu_custom_call.1} parent=5 // pred_check
      %p204 = pneg %p203
    $region26: #{tpu_custom_call.1} parent=5 // pred_check_branch
      %206 = sbr.rel (%p204) target = $region28
    $region27: #{tpu_custom_call.1} parent=5 // pred_region
      // Predicated region
      $region29: #{tpu_custom_call.1} parent=27 // pred_check
        %p207 = pneg %p32
      $region30: #{tpu_custom_call.1} parent=27 // pred_check_branch
        %209 = sbr.rel (%p207) target = $region32
      $region31: #{tpu_custom_call.1} parent=27 // pred_region
        %s210 = smul.u32 2, %s12
        %p211 = scmp.lt.s32.totalorder %s210, 3
        %s212 = scalar_select %p211, %s210, 3
        %s213 = smul.addr %s212, 2
        %s214 = smul.addr %s213, 4
        %s215 = scalar_lea.vmem %s0, %s214
        %s216 = smul.u32 2, %s12
      $region32: #{tpu_custom_call.1} parent=27 // pred_fallthru
        _
      // Predicated region
      $region33: #{tpu_custom_call.1} parent=27 // pred_check
        %p217 = pneg %p58
      $region34: #{tpu_custom_call.1} parent=27 // pred_check_branch
        %219 = sbr.rel (%p217) target = $region36
      $region35: #{tpu_custom_call.1} parent=27 // pred_region
        %s220 = smul.u32 2, %s12
        %p221 = scmp.lt.s32.totalorder %s220, 3
        %s222 = scalar_select %p221, %s220, 3
        %s223 = smul.addr %s222, 8
        %s224 = scalar_lea.vmem %s1, %s223
        %s225 = smul.u32 2, %s12
      $region36: #{tpu_custom_call.1} parent=27 // pred_fallthru
        _
      // Predicated region
      $region37: #{tpu_custom_call.1} parent=27 // pred_check
        %p226 = pneg %p84
      $region38: #{tpu_custom_call.1} parent=27 // pred_check_branch
        %228 = sbr.rel (%p226) target = $region40
      $region39: #{tpu_custom_call.1} parent=27 // pred_region
        %s229 = smul.u32 2, %s12
        %p230 = scmp.lt.s32.totalorder %s229, 3
        %s231 = scalar_select %p230, %s229, 3
        %s232 = smul.addr %s231, 2
        %s233 = smul.addr %s232, 8
        %s234 = scalar_lea.vmem %s2, %s233
        %s235 = smul.u32 2, %s12
      $region40: #{tpu_custom_call.1} parent=27 // pred_fallthru
        _
    $region28: #{tpu_custom_call.1} parent=5 // pred_fallthru
      _
    %p236 = scmp.le.s32.totalorder 1, %s12
    %p237 = scmp.lt.s32.totalorder %s12, 3
    %p238 = pnand %p236, %p237
    %p239 = pneg %p238
    // Predicated region
    $region41: #{tpu_custom_call.1} parent=5 // pred_check
      _
    $region42: #{tpu_custom_call.1} parent=5 // pred_check_branch
      %241 = sbr.rel (%p238) target = $region44
    $region43: #{tpu_custom_call.1} parent=5 // pred_region
      %s242 = ssub.s32 %s12, 1
      %s243 = smul.u32 2, %s17
      %p244 = scmp.lt.s32.totalorder %s243, 3
      %s245 = scalar_select %p244, %s243, 3
      %s246 = smul.addr %s245, 2
      %s247 = smul.addr %s246, 4
      %s248 = scalar_lea.vmem %s0, %s247
      %p249 = pneg %p38
      %p250 = pneg %p35
      %s251 = smul.u32 2, %s17
      %p252 = scmp.lt.s32.totalorder %s251, 3
      %s253 = scalar_select %p252, %s251, 3
      %s254 = smul.addr %s253, 8
      %s255 = scalar_lea.vmem %s1, %s254
      %p256 = pneg %p64
      %p257 = pneg %p61
      %s258 = smul.u32 2, %s17
      %p259 = scmp.lt.s32.totalorder %s258, 3
      %s260 = scalar_select %p259, %s258, 3
      %s261 = smul.addr %s260, 2
      %s262 = smul.addr %s261, 8
      %s263 = scalar_lea.vmem %s2, %s262
      %p264 = pneg %p90
      %p265 = pneg %p87
      %p266 = pneg %p111
      %p267 = pneg %p108
      %p268 = pneg %p132
      %p269 = pneg %p129
      %p270 = pneg %p153
      %p271 = pneg %p150
      %p272 = pneg %p179
      %p273 = pneg %p176
      %s274 = smul.u32 2, %s17
      %p275 = scmp.lt.s32.totalorder %s274, 3
      %s276 = scalar_select %p275, %s274, 3
      %s277 = smul.addr %s276, 4
      %s278 = smul.addr %s277, 8
      %s279 = scalar_lea.vmem %s6, %s278
      %s280 = smul.u32 2, %s17
      %p281 = scmp.lt.s32.totalorder %s280, 3
      %s282 = scalar_select %p281, %s280, 3
      %s283 = smul.addr %s282, 2
      %s284 = smul.addr %s283, 4
      %s285 = scalar_lea.vmem %s0, %s284
      %s286 = smul.u32 2, %s17
      %s287 = smul.u32 2, %s17
      %p288 = scmp.lt.s32.totalorder %s287, 3
      %s289 = scalar_select %p288, %s287, 3
      %s290 = smul.addr %s289, 8
      %s291 = scalar_lea.vmem %s1, %s290
      %s292 = smul.u32 2, %s17
      %s293 = smul.u32 2, %s17
      %p294 = scmp.lt.s32.totalorder %s293, 3
      %s295 = scalar_select %p294, %s293, 3
      %s296 = smul.addr %s295, 2
      %s297 = smul.addr %s296, 8
      %s298 = scalar_lea.vmem %s2, %s297
      %s299 = smul.u32 2, %s17
      %s300 = smul.u32 2, %s17
      %p301 = scmp.lt.s32.totalorder %s300, 3
      %s302 = scalar_select %p301, %s300, 3
      %s303 = smul.addr %s302, 4
      %s304 = smul.addr %s303, 8
      %s305 = scalar_lea.vmem %s6, %s304
      %s306 = smul.u32 2, %s17
      %v307 = vld [vmem:[%s3] sm:$0xff]
      %v308 = vld [vmem:[%s3 + $0x8] sm:$0xff]
      %v309 = vld [vmem:[%s3 + $0x10] sm:$0xff]
      %v310 = vld [vmem:[%s3 + $0x18] sm:$0xff]
      %v311 = vld [vmem:[%s3 + $0x20] sm:$0xff]
      %v312 = vld [vmem:[%s3 + $0x28] sm:$0xff]
      %v313 = vld [vmem:[%s3 + $0x30] sm:$0xff]
      %v314 = vld [vmem:[%s3 + $0x38] sm:$0xff]
      %v315 = vld [vmem:[%s3 + $0x40] sm:$0xff]
      %v316 = vld [vmem:[%s3 + $0x48] sm:$0xff]
      %v317 = vld [vmem:[%s3 + $0x50] sm:$0xff]
      %v318 = vld [vmem:[%s3 + $0x58] sm:$0xff]
      %v319 = vld [vmem:[%s3 + $0x60] sm:$0xff]
      %v320 = vld [vmem:[%s3 + $0x68] sm:$0xff]
      %v321 = vld [vmem:[%s3 + $0x70] sm:$0xff]
      %v322 = vld [vmem:[%s3 + $0x78] sm:$0xff]
      %v323 = vld [vmem:[%s3 + $0x80] sm:$0xff]
      %v324 = vld [vmem:[%s3 + $0x88] sm:$0xff]
      %v325 = vld [vmem:[%s3 + $0x90] sm:$0xff]
      %v326 = vld [vmem:[%s3 + $0x98] sm:$0xff]
      %v327 = vld [vmem:[%s3 + $0xa0] sm:$0xff]
      %v328 = vld [vmem:[%s3 + $0xa8] sm:$0xff]
      %v329 = vld [vmem:[%s3 + $0xb0] sm:$0xff]
      %v330 = vld [vmem:[%s3 + $0xb8] sm:$0xff]
      %v331 = vld [vmem:[%s3 + $0xc0] sm:$0xff]
      %v332 = vld [vmem:[%s3 + $0xc8] sm:$0xff]
      %v333 = vld [vmem:[%s3 + $0xd0] sm:$0xff]
      %v334 = vld [vmem:[%s3 + $0xd8] sm:$0xff]
      %v335 = vld [vmem:[%s3 + $0xe0] sm:$0xff]
      %v336 = vld [vmem:[%s3 + $0xe8] sm:$0xff]
      %v337 = vld [vmem:[%s3 + $0xf0] sm:$0xff]
      %v338 = vld [vmem:[%s3 + $0xf8] sm:$0xff]
      %v339 = vld [vmem:[%s285] sm:$0xff]
      %341 = vst [vmem:[#allocation1] ss:$2 sm:$0xff] %v339
      %v342 = vld.sshfl [vmem:[#allocation1] sm:$0xff pattern:$0x75316420]
      %v343 = vld.sshfl [vmem:[#allocation1 + $0x8] sm:$0xff pattern:$0x75316420]
      %346 = vmatpush.msra.mxu0 %v322
      %347 = vmatpush.msra.mxu0 %v321
      %348 = vmatpush.msra.mxu0 %v320
      %349 = vmatpush.msra.mxu0 %v319
      %350 = vmatpush.msra.mxu0 %v318
      %351 = vmatpush.msra.mxu0 %v317
      %352 = vmatpush.msra.mxu0 %v316
      %353 = vmatpush.msra.mxu0 %v315
      %354 = vmatpush.msra.mxu0 %v314
      %355 = vmatpush.msra.mxu0 %v313
      %356 = vmatpush.msra.mxu0 %v312
      %357 = vmatpush.msra.mxu0 %v311
      %358 = vmatpush.msra.mxu0 %v310
      %359 = vmatpush.msra.mxu0 %v309
      %360 = vmatpush.msra.mxu0 %v308
      %361 = vmatpush.msra.mxu0 %v307
      %362 = vmatmul.f32.gmra.mxu0 %v342
      %v363 = vpop.f32.mrf.mxu0
      %v364 = vadd.f32 0.0, %v363
      %365 = vdwg.mxu0
      %366 = vmatpush.msra.mxu0 %v338
      %367 = vmatpush.msra.mxu0 %v337
      %368 = vmatpush.msra.mxu0 %v336
      %369 = vmatpush.msra.mxu0 %v335
      %370 = vmatpush.msra.mxu0 %v334
      %371 = vmatpush.msra.mxu0 %v333
      %372 = vmatpush.msra.mxu0 %v332
      %373 = vmatpush.msra.mxu0 %v331
      %374 = vmatpush.msra.mxu0 %v330
      %375 = vmatpush.msra.mxu0 %v329
      %376 = vmatpush.msra.mxu0 %v328
      %377 = vmatpush.msra.mxu0 %v327
      %378 = vmatpush.msra.mxu0 %v326
      %379 = vmatpush.msra.mxu0 %v325
      %380 = vmatpush.msra.mxu0 %v324
      %381 = vmatpush.msra.mxu0 %v323
      %382 = vmatmul.f32.gmra.mxu0 %v343
      %v383 = vpop.f32.mrf.mxu0
      %v384 = vadd.f32 %v364, %v383
      %385 = vdwg.mxu0
      %vm386 = vcmask 125952
      %387 = vst.msk [vmem:[%s305] sm:$0xf] %vm386, %v384
      %s388 = scalar_lea.vmem %s285, 8
      %v389 = vld [vmem:[%s388] sm:$0xff]
      %391 = vst [vmem:[#allocation1] ss:$2 sm:$0xff] %v389
      %v392 = vld.sshfl [vmem:[#allocation1] sm:$0xff pattern:$0x75316420]
      %v393 = vld.sshfl [vmem:[#allocation1 + $0x8] sm:$0xff pattern:$0x75316420]
      %396 = vmatpush.msra.mxu0 %v322
      %397 = vmatpush.msra.mxu0 %v321
      %398 = vmatpush.msra.mxu0 %v320
      %399 = vmatpush.msra.mxu0 %v319
      %400 = vmatpush.msra.mxu0 %v318
      %401 = vmatpush.msra.mxu0 %v317
      %402 = vmatpush.msra.mxu0 %v316
      %403 = vmatpush.msra.mxu0 %v315
      %404 = vmatpush.msra.mxu0 %v314
      %405 = vmatpush.msra.mxu0 %v313
      %406 = vmatpush.msra.mxu0 %v312
      %407 = vmatpush.msra.mxu0 %v311
      %408 = vmatpush.msra.mxu0 %v310
      %409 = vmatpush.msra.mxu0 %v309
      %410 = vmatpush.msra.mxu0 %v308
      %411 = vmatpush.msra.mxu0 %v307
      %412 = vmatmul.f32.gmra.mxu0 %v392
      %v413 = vpop.f32.mrf.mxu0
      %v414 = vadd.f32 0.0, %v413
      %415 = vdwg.mxu0
      %416 = vmatpush.msra.mxu0 %v338
      %417 = vmatpush.msra.mxu0 %v337
      %418 = vmatpush.msra.mxu0 %v336
      %419 = vmatpush.msra.mxu0 %v335
      %420 = vmatpush.msra.mxu0 %v334
      %421 = vmatpush.msra.mxu0 %v333
      %422 = vmatpush.msra.mxu0 %v332
      %423 = vmatpush.msra.mxu0 %v331
      %424 = vmatpush.msra.mxu0 %v330
      %425 = vmatpush.msra.mxu0 %v329
      %426 = vmatpush.msra.mxu0 %v328
      %427 = vmatpush.msra.mxu0 %v327
      %428 = vmatpush.msra.mxu0 %v326
      %429 = vmatpush.msra.mxu0 %v325
      %430 = vmatpush.msra.mxu0 %v324
      %431 = vmatpush.msra.mxu0 %v323
      %432 = vmatmul.f32.gmra.mxu0 %v393
      %v433 = vpop.f32.mrf.mxu0
      %v434 = vadd.f32 %v414, %v433
      %435 = vdwg.mxu0
      %s436 = scalar_lea.vmem %s305, 32
      %437 = vst.msk [vmem:[%s436] sm:$0xf] %vm386, %v434
      %v438 = vld [vmem:[%s4] sm:$0xff]
      %v439 = vld [vmem:[%s4 + $0x8] sm:$0xff]
      %v440 = vld [vmem:[%s4 + $0x10] sm:$0xff]
      %v441 = vld [vmem:[%s4 + $0x18] sm:$0xff]
      %v442 = vld [vmem:[%s4 + $0x20] sm:$0xff]
      %v443 = vld [vmem:[%s4 + $0x28] sm:$0xff]
      %v444 = vld [vmem:[%s4 + $0x30] sm:$0xff]
      %v445 = vld [vmem:[%s4 + $0x38] sm:$0xff]
      %v446 = vld [vmem:[%s291] sm:$0xff]
      %vm447 = vcmask 523264
      %v449 = vsel %vm447, %v446, 0
      %451 = vmatpush.msra.mxu0 0.0
      %452 = vmatpush.msra.mxu0 0.0
      %453 = vmatpush.msra.mxu0 0.0
      %454 = vmatpush.msra.mxu0 0.0
      %455 = vmatpush.msra.mxu0 0.0
      %456 = vmatpush.msra.mxu0 0.0
      %457 = vmatpush.msra.mxu0 0.0
      %458 = vmatpush.msra.mxu0 0.0
      %459 = vmatpush.msra.mxu0 %v445
      %460 = vmatpush.msra.mxu0 %v444
      %461 = vmatpush.msra.mxu0 %v443
      %462 = vmatpush.msra.mxu0 %v442
      %463 = vmatpush.msra.mxu0 %v441
      %464 = vmatpush.msra.mxu0 %v440
      %465 = vmatpush.msra.mxu0 %v439
      %466 = vmatpush.msra.mxu0 %v438
      %467 = vmatmul.f32.gmra.mxu0 %v449
      %v468 = vpop.f32.mrf.mxu0
      %v469 = vadd.f32 0.0, %v468
      %470 = vdwg.mxu0
      %vm471 = vcmask 130048
      %472 = vst.msk [vmem:[%s305 + $0x4] sm:$0xff] %vm471, %v469
      %s473 = scalar_lea.vmem %s291, 8
      %v474 = vld [vmem:[%s473] sm:$0xff]
      %v476 = vsel %vm447, %v474, 0
      %478 = vmatpush.msra.mxu0 0.0
      %479 = vmatpush.msra.mxu0 0.0
      %480 = vmatpush.msra.mxu0 0.0
      %481 = vmatpush.msra.mxu0 0.0
      %482 = vmatpush.msra.mxu0 0.0
      %483 = vmatpush.msra.mxu0 0.0
      %484 = vmatpush.msra.mxu0 0.0
      %485 = vmatpush.msra.mxu0 0.0
      %486 = vmatpush.msra.mxu0 %v445
      %487 = vmatpush.msra.mxu0 %v444
      %488 = vmatpush.msra.mxu0 %v443
      %489 = vmatpush.msra.mxu0 %v442
      %490 = vmatpush.msra.mxu0 %v441
      %491 = vmatpush.msra.mxu0 %v440
      %492 = vmatpush.msra.mxu0 %v439
      %493 = vmatpush.msra.mxu0 %v438
      %494 = vmatmul.f32.gmra.mxu0 %v476
      %v495 = vpop.f32.mrf.mxu0
      %v496 = vadd.f32 0.0, %v495
      %497 = vdwg.mxu0
      %498 = vst.msk [vmem:[%s436 + $0x4] sm:$0xff] %vm471, %v496
      %v499 = vld [vmem:[%s5] sm:$0xff]
      %v500 = vld [vmem:[%s5 + $0x8] sm:$0xff]
      %v501 = vld [vmem:[%s5 + $0x10] sm:$0xff]
      %v502 = vld [vmem:[%s5 + $0x18] sm:$0xff]
      %v503 = vld [vmem:[%s5 + $0x20] sm:$0xff]
      %v504 = vld [vmem:[%s5 + $0x28] sm:$0xff]
      %v505 = vld [vmem:[%s5 + $0x30] sm:$0x1]
      %v506 = vld [vmem:[%s298] sm:$0xff]
      %v507 = vld [vmem:[%s298 + $0x8] sm:$0xff]
      %vm508 = vcmask 400384
      %v510 = vsel %vm508, %v506, 0
      %v513 = vsel %vm508, %v507, 0
      %vm515 = vcmask 1040384
      %v517 = vsel %vm515, %v505, 0
      %519 = vmatpush.msra.mxu0 0.0
      %520 = vmatpush.msra.mxu0 0.0
      %521 = vmatpush.msra.mxu0 0.0
      %522 = vmatpush.msra.mxu0 0.0
      %523 = vmatpush.msra.mxu0 0.0
      %524 = vmatpush.msra.mxu0 0.0
      %525 = vmatpush.msra.mxu0 0.0
      %526 = vmatpush.msra.mxu0 0.0
      %527 = vmatpush.msra.mxu0 0.0
      %528 = vmatpush.msra.mxu0 %v517
      %529 = vmatpush.msra.mxu0 %v504
      %530 = vmatpush.msra.mxu0 %v503
      %531 = vmatpush.msra.mxu0 %v502
      %532 = vmatpush.msra.mxu0 %v501
      %533 = vmatpush.msra.mxu0 %v500
      %534 = vmatpush.msra.mxu0 %v499
      %535 = vmatmul.f32.gmra.mxu0 %v510
      %v536 = vpop.f32.mrf.mxu0
      %v537 = vadd.f32 0.0, %v536
      %538 = vmatmul.f32.gmra.mxu0 %v513
      %v539 = vpop.f32.mrf.mxu0
      %v540 = vadd.f32 0.0, %v539
      %541 = vdwg.mxu0
      %542 = vst.msk [vmem:[%s305 + $0xc] sm:$0xff] %vm471, %v537
      %543 = vst.msk [vmem:[%s305 + $0x14] sm:$0xff] %vm471, %v540
      %s544 = scalar_lea.vmem %s298, 16
      %v545 = vld [vmem:[%s544] sm:$0xff]
      %v546 = vld [vmem:[%s544 + $0x8] sm:$0xff]
      %v548 = vsel %vm508, %v545, 0
      %v551 = vsel %vm508, %v546, 0
      %553 = vmatpush.msra.mxu0 0.0
      %554 = vmatpush.msra.mxu0 0.0
      %555 = vmatpush.msra.mxu0 0.0
      %556 = vmatpush.msra.mxu0 0.0
      %557 = vmatpush.msra.mxu0 0.0
      %558 = vmatpush.msra.mxu0 0.0
      %559 = vmatpush.msra.mxu0 0.0
      %560 = vmatpush.msra.mxu0 0.0
      %561 = vmatpush.msra.mxu0 0.0
      %562 = vmatpush.msra.mxu0 %v517
      %563 = vmatpush.msra.mxu0 %v504
      %564 = vmatpush.msra.mxu0 %v503
      %565 = vmatpush.msra.mxu0 %v502
      %566 = vmatpush.msra.mxu0 %v501
      %567 = vmatpush.msra.mxu0 %v500
      %568 = vmatpush.msra.mxu0 %v499
      %569 = vmatmul.f32.gmra.mxu0 %v548
      %v570 = vpop.f32.mrf.mxu0
      %v571 = vadd.f32 0.0, %v570
      %572 = vmatmul.f32.gmra.mxu0 %v551
      %v573 = vpop.f32.mrf.mxu0
      %v574 = vadd.f32 0.0, %v573
      %575 = vdwg.mxu0
      %576 = vst.msk [vmem:[%s436 + $0xc] sm:$0xff] %vm471, %v571
      %577 = vst.msk [vmem:[%s436 + $0x14] sm:$0xff] %vm471, %v574
      %s578 = smul.u32 2, %s17
      %p579 = scmp.lt.s32.totalorder %s578, 3
      %s580 = scalar_select %p579, %s578, 3
      %s581 = smul.addr %s580, 4
      %s582 = smul.addr %s581, 8
      %s583 = scalar_lea.vmem %s6, %s582
      // Predicated region
      $region45: #{tpu_custom_call.1} parent=43 // pred_check
        %p584 = pneg %p176
      $region46: #{tpu_custom_call.1} parent=43 // pred_check_branch
        %586 = sbr.rel (%p584) target = $region48
      $region47: #{tpu_custom_call.1} parent=43 // pred_region
        %s587 = smul.u32 2, %s17
      $region48: #{tpu_custom_call.1} parent=43 // pred_fallthru
        _
    $region44: #{tpu_custom_call.1} parent=5 // pred_fallthru
      _
    %p588 = scmp.le.s32.totalorder 2, %s12
    // Predicated region
    $region49: #{tpu_custom_call.1} parent=5 // pred_check
      %p589 = pneg %p588
    $region50: #{tpu_custom_call.1} parent=5 // pred_check_branch
      %591 = sbr.rel (%p589) target = $region52
    $region51: #{tpu_custom_call.1} parent=5 // pred_region
      %s592 = ssub.s32 %s12, 2
      // Predicated region
      $region53: #{tpu_custom_call.1} parent=51 // pred_check
        %p593 = pneg %p182
      $region54: #{tpu_custom_call.1} parent=51 // pred_check_branch
        %595 = sbr.rel (%p593) target = $region56
      $region55: #{tpu_custom_call.1} parent=51 // pred_region
        %s596 = smul.u32 2, %s18
        %p597 = scmp.lt.s32.totalorder %s596, 3
        %s598 = scalar_select %p597, %s596, 3
        %s599 = smul.addr %s598, 4
        %s600 = smul.addr %s599, 8
        %s601 = scalar_lea.vmem %s6, %s600
      $region56: #{tpu_custom_call.1} parent=51 // pred_fallthru
        _
    $region52: #{tpu_custom_call.1} parent=5 // pred_fallthru
      _
  $region6: #{tpu_custom_call.1} parent=0 // loop_footer
    %s16 = sadd.s32 1, %s12
  $region7: #{tpu_custom_call.1} parent=0 // loop_footer_branch
    %11 = sbr.rel target = $region3
  $region8: #{tpu_custom_call.1} parent=0 // loop_exit
    _

// kernel: tpu_custom_call.1
$region0: #{tpu_custom_call.1}
  #allocation0 [shape = 'u32[]', space=smem, size = 0x4, offset = 0x4, fixed_abs, tag = 'smem constant byte address 0x4 - core index']
  #allocation1 [shape = 'u32[72,128]{1,0:T(1,128)}', space=vmem, size = 0x9000, scoped, tag = 'internal scratch']
  %s0 = inlined_call_operand.vmem [shape: f32[4,4,256], index: 0, kind: input, shape index: {}]
  %s1 = inlined_call_operand.vmem [shape: f32[4,8,64], index: 1, kind: input, shape index: {}]
  %s2 = inlined_call_operand.vmem [shape: f32[4,16,49], index: 2, kind: input, shape index: {}]
  %s3 = inlined_call_operand.vmem [shape: f32[256,16], index: 3, kind: input, shape index: {}]
  %s4 = inlined_call_operand.vmem [shape: f32[64,16], index: 4, kind: input, shape index: {}]
  %s5 = inlined_call_operand.vmem [shape: f32[49,16], index: 5, kind: input, shape index: {}]
  %s6 = inlined_call_operand.vmem [shape: f32[4,28,16], index: 6, kind: output, shape index: {}]
  %s7 = sld [smem:[#allocation0]]
  $region57: #{tpu_custom_call.1} parent=0
    _
  %s9 = ssub.s32 1, %s7
  %s10 = scalar_select 0, %s9, %s7
  loop: start=0, step=1, limit=4
  $region2: #{tpu_custom_call.1} parent=0 // loop_pre_header
    _
  $region3: #{tpu_custom_call.1} parent=0 // loop_header
    %s12 = sphi 0, %s16
    %p13 = scmp.ge.s32.totalorder %s12, 4
    %s22 = sphi 0, %s24
    %s25 = sphi 0, %s22
    %s26 = sphi 0, %s25
    %s42 = sphi 0, %s26
    %s48 = sphi 0, %s50
    %s51 = sphi 0, %s48
    %s52 = sphi 0, %s51
    %s68 = sphi 0, %s52
    %s74 = sphi 0, %s76
    %s77 = sphi 0, %s74
    %s78 = sphi 0, %s77
    %s94 = sphi 0, %s78
    %s98 = sphi 0, %s98
    %s100 = sphi 0, %s98
    %s101 = sphi 0, %s100
    %s115 = sphi 0, %s101
    %s119 = sphi 0, %s119
    %s121 = sphi 0, %s119
    %s122 = sphi 0, %s121
    %s136 = sphi 0, %s122
    %s140 = sphi 0, %s140
    %s142 = sphi 0, %s140
    %s143 = sphi 0, %s142
    %s157 = sphi 0, %s143
    %s163 = sphi 0, %s165
    %s166 = sphi 0, %s163
    %s167 = sphi 0, %s166
    %s183 = sphi 0, %s167
  $region4: #{tpu_custom_call.1} parent=0 // loop_header_branch
    %15 = sbr.rel (%p13) target = $region8
  $region5: #{tpu_custom_call.1} parent=0 // loop_body
    %s17 = ssub.s32 %s12, 1
    %s18 = ssub.s32 %s12, 2
    %s19 = sadd.s32 %s12, 1
    %s20 = ssub.s32 %s12, %s19
    %p21 = scmp.eq.s32.totalorder %s20, 0
    %s23 = sadd.s32 %s22, 1
    %s24 = scalar_select %p21, %s22, %s23
    %p27 = pneg %p21
    %p28 = scmp.eq.s32.totalorder %s12, 1
    %p29 = por %p27, %p28
    %p30 = scmp.ne.s32.totalorder %s22, %s25
    %p31 = scmp.eq.s32.totalorder %s12, 0
    %p32 = por %p30, %p31
    %p33 = scmp.ne.s32.totalorder %s22, %s25
    %p34 = scmp.eq.s32.totalorder %s17, 1
    %p35 = por %p33, %p34
    %p36 = scmp.ne.s32.totalorder %s25, %s26
    %p37 = scmp.eq.s32.totalorder %s17, 0
    %p38 = por %p36, %p37
    %p39 = scmp.ne.s32.totalorder %s25, %s26
    %p40 = scmp.eq.s32.totalorder %s18, 1
    %p41 = por %p39, %p40
    %p43 = scmp.ne.s32.totalorder %s26, %s42
    %p44 = scmp.eq.s32.totalorder %s18, 0
    %p45 = por %p43, %p44
    %s46 = ssub.s32 %s12, %s19
    %p47 = scmp.eq.s32.totalorder %s46, 0
    %s49 = sadd.s32 %s48, 1
    %s50 = scalar_select %p47, %s48, %s49
    %p53 = pneg %p47
    %p54 = scmp.eq.s32.totalorder %s12, 1
    %p55 = por %p53, %p54
    %p56 = scmp.ne.s32.totalorder %s48, %s51
    %p57 = scmp.eq.s32.totalorder %s12, 0
    %p58 = por %p56, %p57
    %p59 = scmp.ne.s32.totalorder %s48, %s51
    %p60 = scmp.eq.s32.totalorder %s17, 1
    %p61 = por %p59, %p60
    %p62 = scmp.ne.s32.totalorder %s51, %s52
    %p63 = scmp.eq.s32.totalorder %s17, 0
    %p64 = por %p62, %p63
    %p65 = scmp.ne.s32.totalorder %s51, %s52
    %p66 = scmp.eq.s32.totalorder %s18, 1
    %p67 = por %p65, %p66
    %p69 = scmp.ne.s32.totalorder %s52, %s68
    %p70 = scmp.eq.s32.totalorder %s18, 0
    %p71 = por %p69, %p70
    %s72 = ssub.s32 %s12, %s19
    %p73 = scmp.eq.s32.totalorder %s72, 0
    %s75 = sadd.s32 %s74, 1
    %s76 = scalar_select %p73, %s74, %s75
    %p79 = pneg %p73
    %p80 = scmp.eq.s32.totalorder %s12, 1
    %p81 = por %p79, %p80
    %p82 = scmp.ne.s32.totalorder %s74, %s77
    %p83 = scmp.eq.s32.totalorder %s12, 0
    %p84 = por %p82, %p83
    %p85 = scmp.ne.s32.totalorder %s74, %s77
    %p86 = scmp.eq.s32.totalorder %s17, 1
    %p87 = por %p85, %p86
    %p88 = scmp.ne.s32.totalorder %s77, %s78
    %p89 = scmp.eq.s32.totalorder %s17, 0
    %p90 = por %p88, %p89
    %p91 = scmp.ne.s32.totalorder %s77, %s78
    %p92 = scmp.eq.s32.totalorder %s18, 1
    %p93 = por %p91, %p92
    %p95 = scmp.ne.s32.totalorder %s78, %s94
    %p96 = scmp.eq.s32.totalorder %s18, 0
    %p97 = por %p95, %p96
    %s99 = sadd.s32 %s98, 1
    %p102 = scmp.eq.s32.totalorder %s12, 1
    %p103 = scmp.ne.s32.totalorder %s98, %s100
    %p104 = scmp.eq.s32.totalorder %s12, 0
    %p105 = por %p103, %p104
    %p106 = scmp.ne.s32.totalorder %s98, %s100
    %p107 = scmp.eq.s32.totalorder %s17, 1
    %p108 = por %p106, %p107
    %p109 = scmp.ne.s32.totalorder %s100, %s101
    %p110 = scmp.eq.s32.totalorder %s17, 0
    %p111 = por %p109, %p110
    %p112 = scmp.ne.s32.totalorder %s100, %s101
    %p113 = scmp.eq.s32.totalorder %s18, 1
    %p114 = por %p112, %p113
    %p116 = scmp.ne.s32.totalorder %s101, %s115
    %p117 = scmp.eq.s32.totalorder %s18, 0
    %p118 = por %p116, %p117
    %s120 = sadd.s32 %s119, 1
    %p123 = scmp.eq.s32.totalorder %s12, 1
    %p124 = scmp.ne.s32.totalorder %s119, %s121
    %p125 = scmp.eq.s32.totalorder %s12, 0
    %p126 = por %p124, %p125
    %p127 = scmp.ne.s32.totalorder %s119, %s121
    %p128 = scmp.eq.s32.totalorder %s17, 1
    %p129 = por %p127, %p128
    %p130 = scmp.ne.s32.totalorder %s121, %s122
    %p131 = scmp.eq.s32.totalorder %s17, 0
    %p132 = por %p130, %p131
    %p133 = scmp.ne.s32.totalorder %s121, %s122
    %p134 = scmp.eq.s32.totalorder %s18, 1
    %p135 = por %p133, %p134
    %p137 = scmp.ne.s32.totalorder %s122, %s136
    %p138 = scmp.eq.s32.totalorder %s18, 0
    %p139 = por %p137, %p138
    %s141 = sadd.s32 %s140, 1
    %p144 = scmp.eq.s32.totalorder %s12, 1
    %p145 = scmp.ne.s32.totalorder %s140, %s142
    %p146 = scmp.eq.s32.totalorder %s12, 0
    %p147 = por %p145, %p146
    %p148 = scmp.ne.s32.totalorder %s140, %s142
    %p149 = scmp.eq.s32.totalorder %s17, 1
    %p150 = por %p148, %p149
    %p151 = scmp.ne.s32.totalorder %s142, %s143
    %p152 = scmp.eq.s32.totalorder %s17, 0
    %p153 = por %p151, %p152
    %p154 = scmp.ne.s32.totalorder %s142, %s143
    %p155 = scmp.eq.s32.totalorder %s18, 1
    %p156 = por %p154, %p155
    %p158 = scmp.ne.s32.totalorder %s143, %s157
    %p159 = scmp.eq.s32.totalorder %s18, 0
    %p160 = por %p158, %p159
    %s161 = ssub.s32 %s12, %s19
    %p162 = scmp.eq.s32.totalorder %s161, 0
    %s164 = sadd.s32 %s163, 1
    %s165 = scalar_select %p162, %s163, %s164
    %p168 = pneg %p162
    %p169 = scmp.eq.s32.totalorder %s12, 1
    %p170 = por %p168, %p169
    %p171 = scmp.ne.s32.totalorder %s163, %s166
    %p172 = scmp.eq.s32.totalorder %s12, 0
    %p173 = por %p171, %p172
    %p174 = scmp.ne.s32.totalorder %s163, %s166
    %p175 = scmp.eq.s32.totalorder %s17, 1
    %p176 = por %p174, %p175
    %p177 = scmp.ne.s32.totalorder %s166, %s167
    %p178 = scmp.eq.s32.totalorder %s17, 0
    %p179 = por %p177, %p178
    %p180 = scmp.ne.s32.totalorder %s166, %s167
    %p181 = scmp.eq.s32.totalorder %s18, 1
    %p182 = por %p180, %p181
    %p184 = scmp.ne.s32.totalorder %s167, %s183
    %p185 = scmp.eq.s32.totalorder %s18, 0
    %p186 = por %p184, %p185
    %p187 = scmp.le.s32.totalorder 1, %s12
    %p188 = scmp.lt.s32.totalorder %s12, 3
    %p189 = pnand %p187, %p188
    %p190 = pneg %p189
    // Predicated region
    $region9: #{tpu_custom_call.1} parent=5 // pred_check
      _
    $region10: #{tpu_custom_call.1} parent=5 // pred_check_branch
      %192 = sbr.rel (%p189) target = $region12
    $region11: #{tpu_custom_call.1} parent=5 // pred_region
      %s193 = ssub.s32 %s12, 1
      // Predicated region
      $region13: #{tpu_custom_call.1} parent=11 // pred_check
        %p194 = pneg %p111
      $region14: #{tpu_custom_call.1} parent=11 // pred_check_branch
        %196 = sbr.rel (%p194) target = $region16
      $region15: #{tpu_custom_call.1} parent=11 // pred_region
        _
      $region16: #{tpu_custom_call.1} parent=11 // pred_fallthru
        _
      // Predicated region
      $region17: #{tpu_custom_call.1} parent=11 // pred_check
        %p197 = pneg %p132
      $region18: #{tpu_custom_call.1} parent=11 // pred_check_branch
        %199 = sbr.rel (%p197) target = $region20
      $region19: #{tpu_custom_call.1} parent=11 // pred_region
        _
      $region20: #{tpu_custom_call.1} parent=11 // pred_fallthru
        _
      // Predicated region
      $region21: #{tpu_custom_call.1} parent=11 // pred_check
        %p200 = pneg %p153
      $region22: #{tpu_custom_call.1} parent=11 // pred_check_branch
        %202 = sbr.rel (%p200) target = $region24
      $region23: #{tpu_custom_call.1} parent=11 // pred_region
        _
      $region24: #{tpu_custom_call.1} parent=11 // pred_fallthru
        _
    $region12: #{tpu_custom_call.1} parent=5 // pred_fallthru
      _
    %p203 = scmp.lt.s32.totalorder %s12, 2
    // Predicated region
    $region25: #{tpu_custom_call.1} parent=5 // pred_check
      %p204 = pneg %p203
    $region26: #{tpu_custom_call.1} parent=5 // pred_check_branch
      %206 = sbr.rel (%p204) target = $region28
    $region27: #{tpu_custom_call.1} parent=5 // pred_region
      // Predicated region
      $region29: #{tpu_custom_call.1} parent=27 // pred_check
        %p207 = pneg %p32
      $region30: #{tpu_custom_call.1} parent=27 // pred_check_branch
        %209 = sbr.rel (%p207) target = $region32
      $region31: #{tpu_custom_call.1} parent=27 // pred_region
        %s210 = smul.u32 2, %s12
        %p211 = scmp.lt.s32.totalorder %s210, 3
        %s212 = scalar_select %p211, %s210, 3
        %s213 = smul.addr %s212, 2
        %s214 = smul.addr %s213, 4
        %s215 = scalar_lea.vmem %s0, %s214
        %s216 = smul.u32 2, %s12
      $region32: #{tpu_custom_call.1} parent=27 // pred_fallthru
        _
      // Predicated region
      $region33: #{tpu_custom_call.1} parent=27 // pred_check
        %p217 = pneg %p58
      $region34: #{tpu_custom_call.1} parent=27 // pred_check_branch
        %219 = sbr.rel (%p217) target = $region36
      $region35: #{tpu_custom_call.1} parent=27 // pred_region
        %s220 = smul.u32 2, %s12
        %p221 = scmp.lt.s32.totalorder %s220, 3
        %s222 = scalar_select %p221, %s220, 3
        %s223 = smul.addr %s222, 8
        %s224 = scalar_lea.vmem %s1, %s223
        %s225 = smul.u32 2, %s12
      $region36: #{tpu_custom_call.1} parent=27 // pred_fallthru
        _
      // Predicated region
      $region37: #{tpu_custom_call.1} parent=27 // pred_check
        %p226 = pneg %p84
      $region38: #{tpu_custom_call.1} parent=27 // pred_check_branch
        %228 = sbr.rel (%p226) target = $region40
      $region39: #{tpu_custom_call.1} parent=27 // pred_region
        %s229 = smul.u32 2, %s12
        %p230 = scmp.lt.s32.totalorder %s229, 3
        %s231 = scalar_select %p230, %s229, 3
        %s232 = smul.addr %s231, 2
        %s233 = smul.addr %s232, 8
        %s234 = scalar_lea.vmem %s2, %s233
        %s235 = smul.u32 2, %s12
      $region40: #{tpu_custom_call.1} parent=27 // pred_fallthru
        _
    $region28: #{tpu_custom_call.1} parent=5 // pred_fallthru
      _
    %p236 = scmp.le.s32.totalorder 1, %s12
    %p237 = scmp.lt.s32.totalorder %s12, 3
    %p238 = pnand %p236, %p237
    %p239 = pneg %p238
    // Predicated region
    $region41: #{tpu_custom_call.1} parent=5 // pred_check
      _
    $region42: #{tpu_custom_call.1} parent=5 // pred_check_branch
      %241 = sbr.rel (%p238) target = $region44
    $region43: #{tpu_custom_call.1} parent=5 // pred_region
      %s242 = ssub.s32 %s12, 1
      %s243 = smul.u32 2, %s17
      %p244 = scmp.lt.s32.totalorder %s243, 3
      %s245 = scalar_select %p244, %s243, 3
      %s246 = smul.addr %s245, 2
      %s247 = smul.addr %s246, 4
      %s248 = scalar_lea.vmem %s0, %s247
      %p249 = pneg %p38
      %p250 = pneg %p35
      %s251 = smul.u32 2, %s17
      %p252 = scmp.lt.s32.totalorder %s251, 3
      %s253 = scalar_select %p252, %s251, 3
      %s254 = smul.addr %s253, 8
      %s255 = scalar_lea.vmem %s1, %s254
      %p256 = pneg %p64
      %p257 = pneg %p61
      %s258 = smul.u32 2, %s17
      %p259 = scmp.lt.s32.totalorder %s258, 3
      %s260 = scalar_select %p259, %s258, 3
      %s261 = smul.addr %s260, 2
      %s262 = smul.addr %s261, 8
      %s263 = scalar_lea.vmem %s2, %s262
      %p264 = pneg %p90
      %p265 = pneg %p87
      %p266 = pneg %p111
      %p267 = pneg %p108
      %p268 = pneg %p132
      %p269 = pneg %p129
      %p270 = pneg %p153
      %p271 = pneg %p150
      %p272 = pneg %p179
      %p273 = pneg %p176
      %s274 = smul.u32 2, %s17
      %p275 = scmp.lt.s32.totalorder %s274, 3
      %s276 = scalar_select %p275, %s274, 3
      %s277 = smul.addr %s276, 4
      %s278 = smul.addr %s277, 8
      %s279 = scalar_lea.vmem %s6, %s278
      %s280 = smul.u32 2, %s17
      %p281 = scmp.lt.s32.totalorder %s280, 3
      %s282 = scalar_select %p281, %s280, 3
      %s283 = smul.addr %s282, 2
      %s284 = smul.addr %s283, 4
      %s285 = scalar_lea.vmem %s0, %s284
      %s286 = smul.u32 2, %s17
      %s287 = smul.u32 2, %s17
      %p288 = scmp.lt.s32.totalorder %s287, 3
      %s289 = scalar_select %p288, %s287, 3
      %s290 = smul.addr %s289, 8
      %s291 = scalar_lea.vmem %s1, %s290
      %s292 = smul.u32 2, %s17
      %s293 = smul.u32 2, %s17
      %p294 = scmp.lt.s32.totalorder %s293, 3
      %s295 = scalar_select %p294, %s293, 3
      %s296 = smul.addr %s295, 2
      %s297 = smul.addr %s296, 8
      %s298 = scalar_lea.vmem %s2, %s297
      %s299 = smul.u32 2, %s17
      %s300 = smul.u32 2, %s17
      %p301 = scmp.lt.s32.totalorder %s300, 3
      %s302 = scalar_select %p301, %s300, 3
      %s303 = smul.addr %s302, 4
      %s304 = smul.addr %s303, 8
      %s305 = scalar_lea.vmem %s6, %s304
      %s306 = smul.u32 2, %s17
      %v307 = vld [vmem:[%s3] sm:$0xff]
      %v308 = vld [vmem:[%s3 + $0x8] sm:$0xff]
      %v309 = vld [vmem:[%s3 + $0x10] sm:$0xff]
      %v310 = vld [vmem:[%s3 + $0x18] sm:$0xff]
      %v311 = vld [vmem:[%s3 + $0x20] sm:$0xff]
      %v312 = vld [vmem:[%s3 + $0x28] sm:$0xff]
      %v313 = vld [vmem:[%s3 + $0x30] sm:$0xff]
      %v314 = vld [vmem:[%s3 + $0x38] sm:$0xff]
      %v315 = vld [vmem:[%s3 + $0x40] sm:$0xff]
      %v316 = vld [vmem:[%s3 + $0x48] sm:$0xff]
      %v317 = vld [vmem:[%s3 + $0x50] sm:$0xff]
      %v318 = vld [vmem:[%s3 + $0x58] sm:$0xff]
      %v319 = vld [vmem:[%s3 + $0x60] sm:$0xff]
      %v320 = vld [vmem:[%s3 + $0x68] sm:$0xff]
      %v321 = vld [vmem:[%s3 + $0x70] sm:$0xff]
      %v322 = vld [vmem:[%s3 + $0x78] sm:$0xff]
      %v323 = vld [vmem:[%s3 + $0x80] sm:$0xff]
      %v324 = vld [vmem:[%s3 + $0x88] sm:$0xff]
      %v325 = vld [vmem:[%s3 + $0x90] sm:$0xff]
      %v326 = vld [vmem:[%s3 + $0x98] sm:$0xff]
      %v327 = vld [vmem:[%s3 + $0xa0] sm:$0xff]
      %v328 = vld [vmem:[%s3 + $0xa8] sm:$0xff]
      %v329 = vld [vmem:[%s3 + $0xb0] sm:$0xff]
      %v330 = vld [vmem:[%s3 + $0xb8] sm:$0xff]
      %v331 = vld [vmem:[%s3 + $0xc0] sm:$0xff]
      %v332 = vld [vmem:[%s3 + $0xc8] sm:$0xff]
      %v333 = vld [vmem:[%s3 + $0xd0] sm:$0xff]
      %v334 = vld [vmem:[%s3 + $0xd8] sm:$0xff]
      %v335 = vld [vmem:[%s3 + $0xe0] sm:$0xff]
      %v336 = vld [vmem:[%s3 + $0xe8] sm:$0xff]
      %v337 = vld [vmem:[%s3 + $0xf0] sm:$0xff]
      %v338 = vld [vmem:[%s3 + $0xf8] sm:$0xff]
      %v339 = vld [vmem:[%s285] sm:$0xff]
      %341 = vst [vmem:[#allocation1] ss:$2 sm:$0xff] %v339
      %v342 = vld.sshfl [vmem:[#allocation1] sm:$0xff pattern:$0x75316420]
      %v343 = vld.sshfl [vmem:[#allocation1 + $0x8] sm:$0xff pattern:$0x75316420]
      %346 = vmatpush.msra.mxu0 %v322
      %347 = vmatpush.msra.mxu0 %v321
      %348 = vmatpush.msra.mxu0 %v320
      %349 = vmatpush.msra.mxu0 %v319
      %350 = vmatpush.msra.mxu0 %v318
      %351 = vmatpush.msra.mxu0 %v317
      %352 = vmatpush.msra.mxu0 %v316
      %353 = vmatpush.msra.mxu0 %v315
      %354 = vmatpush.msra.mxu0 %v314
      %355 = vmatpush.msra.mxu0 %v313
      %356 = vmatpush.msra.mxu0 %v312
      %357 = vmatpush.msra.mxu0 %v311
      %358 = vmatpush.msra.mxu0 %v310
      %359 = vmatpush.msra.mxu0 %v309
      %360 = vmatpush.msra.mxu0 %v308
      %361 = vmatpush.msra.mxu0 %v307
      %362 = vmatmul.f32.gmra.mxu0 %v342
      %v363 = vpop.f32.mrf.mxu0
      %v364 = vadd.f32 0.0, %v363
      %365 = vdwg.mxu0
      %366 = vmatpush.msra.mxu0 %v338
      %367 = vmatpush.msra.mxu0 %v337
      %368 = vmatpush.msra.mxu0 %v336
      %369 = vmatpush.msra.mxu0 %v335
      %370 = vmatpush.msra.mxu0 %v334
      %371 = vmatpush.msra.mxu0 %v333
      %372 = vmatpush.msra.mxu0 %v332
      %373 = vmatpush.msra.mxu0 %v331
      %374 = vmatpush.msra.mxu0 %v330
      %375 = vmatpush.msra.mxu0 %v329
      %376 = vmatpush.msra.mxu0 %v328
      %377 = vmatpush.msra.mxu0 %v327
      %378 = vmatpush.msra.mxu0 %v326
      %379 = vmatpush.msra.mxu0 %v325
      %380 = vmatpush.msra.mxu0 %v324
      %381 = vmatpush.msra.mxu0 %v323
      %382 = vmatmul.f32.gmra.mxu0 %v343
      %v383 = vpop.f32.mrf.mxu0
      %v384 = vadd.f32 %v364, %v383
      %385 = vdwg.mxu0
      %vm386 = vcmask 125952
      %387 = vst.msk [vmem:[%s305] sm:$0xf] %vm386, %v384
      %s388 = scalar_lea.vmem %s285, 8
      %v389 = vld [vmem:[%s388] sm:$0xff]
      %391 = vst [vmem:[#allocation1] ss:$2 sm:$0xff] %v389
      %v392 = vld.sshfl [vmem:[#allocation1] sm:$0xff pattern:$0x75316420]
      %v393 = vld.sshfl [vmem:[#allocation1 + $0x8] sm:$0xff pattern:$0x75316420]
      %396 = vmatpush.msra.mxu0 %v322
      %397 = vmatpush.msra.mxu0 %v321
      %398 = vmatpush.msra.mxu0 %v320
      %399 = vmatpush.msra.mxu0 %v319
      %400 = vmatpush.msra.mxu0 %v318
      %401 = vmatpush.msra.mxu0 %v317
      %402 = vmatpush.msra.mxu0 %v316
      %403 = vmatpush.msra.mxu0 %v315
      %404 = vmatpush.msra.mxu0 %v314
      %405 = vmatpush.msra.mxu0 %v313
      %406 = vmatpush.msra.mxu0 %v312
      %407 = vmatpush.msra.mxu0 %v311
      %408 = vmatpush.msra.mxu0 %v310
      %409 = vmatpush.msra.mxu0 %v309
      %410 = vmatpush.msra.mxu0 %v308
      %411 = vmatpush.msra.mxu0 %v307
      %412 = vmatmul.f32.gmra.mxu0 %v392
      %v413 = vpop.f32.mrf.mxu0
      %v414 = vadd.f32 0.0, %v413
      %415 = vdwg.mxu0
      %416 = vmatpush.msra.mxu0 %v338
      %417 = vmatpush.msra.mxu0 %v337
      %418 = vmatpush.msra.mxu0 %v336
      %419 = vmatpush.msra.mxu0 %v335
      %420 = vmatpush.msra.mxu0 %v334
      %421 = vmatpush.msra.mxu0 %v333
      %422 = vmatpush.msra.mxu0 %v332
      %423 = vmatpush.msra.mxu0 %v331
      %424 = vmatpush.msra.mxu0 %v330
      %425 = vmatpush.msra.mxu0 %v329
      %426 = vmatpush.msra.mxu0 %v328
      %427 = vmatpush.msra.mxu0 %v327
      %428 = vmatpush.msra.mxu0 %v326
      %429 = vmatpush.msra.mxu0 %v325
      %430 = vmatpush.msra.mxu0 %v324
      %431 = vmatpush.msra.mxu0 %v323
      %432 = vmatmul.f32.gmra.mxu0 %v393
      %v433 = vpop.f32.mrf.mxu0
      %v434 = vadd.f32 %v414, %v433
      %435 = vdwg.mxu0
      %s436 = scalar_lea.vmem %s305, 32
      %437 = vst.msk [vmem:[%s436] sm:$0xf] %vm386, %v434
      %v438 = vld [vmem:[%s4] sm:$0xff]
      %v439 = vld [vmem:[%s4 + $0x8] sm:$0xff]
      %v440 = vld [vmem:[%s4 + $0x10] sm:$0xff]
      %v441 = vld [vmem:[%s4 + $0x18] sm:$0xff]
      %v442 = vld [vmem:[%s4 + $0x20] sm:$0xff]
      %v443 = vld [vmem:[%s4 + $0x28] sm:$0xff]
      %v444 = vld [vmem:[%s4 + $0x30] sm:$0xff]
      %v445 = vld [vmem:[%s4 + $0x38] sm:$0xff]
      %v446 = vld [vmem:[%s291] sm:$0xff]
      %vm447 = vcmask 523264
      %v449 = vsel %vm447, %v446, 0
      %451 = vmatpush.msra.mxu0 0.0
      %452 = vmatpush.msra.mxu0 0.0
      %453 = vmatpush.msra.mxu0 0.0
      %454 = vmatpush.msra.mxu0 0.0
      %455 = vmatpush.msra.mxu0 0.0
      %456 = vmatpush.msra.mxu0 0.0
      %457 = vmatpush.msra.mxu0 0.0
      %458 = vmatpush.msra.mxu0 0.0
      %459 = vmatpush.msra.mxu0 %v445
      %460 = vmatpush.msra.mxu0 %v444
      %461 = vmatpush.msra.mxu0 %v443
      %462 = vmatpush.msra.mxu0 %v442
      %463 = vmatpush.msra.mxu0 %v441
      %464 = vmatpush.msra.mxu0 %v440
      %465 = vmatpush.msra.mxu0 %v439
      %466 = vmatpush.msra.mxu0 %v438
      %467 = vmatmul.f32.gmra.mxu0 %v449
      %v468 = vpop.f32.mrf.mxu0
      %v469 = vadd.f32 0.0, %v468
      %470 = vdwg.mxu0
      %vm471 = vcmask 130048
      %472 = vst.msk [vmem:[%s305 + $0x4] sm:$0xff] %vm471, %v469
      %s473 = scalar_lea.vmem %s291, 8
      %v474 = vld [vmem:[%s473] sm:$0xff]
      %v476 = vsel %vm447, %v474, 0
      %478 = vmatpush.msra.mxu0 0.0
      %479 = vmatpush.msra.mxu0 0.0
      %480 = vmatpush.msra.mxu0 0.0
      %481 = vmatpush.msra.mxu0 0.0
      %482 = vmatpush.msra.mxu0 0.0
      %483 = vmatpush.msra.mxu0 0.0
      %484 = vmatpush.msra.mxu0 0.0
      %485 = vmatpush.msra.mxu0 0.0
      %486 = vmatpush.msra.mxu0 %v445
      %487 = vmatpush.msra.mxu0 %v444
      %488 = vmatpush.msra.mxu0 %v443
      %489 = vmatpush.msra.mxu0 %v442
      %490 = vmatpush.msra.mxu0 %v441
      %491 = vmatpush.msra.mxu0 %v440
      %492 = vmatpush.msra.mxu0 %v439
      %493 = vmatpush.msra.mxu0 %v438
      %494 = vmatmul.f32.gmra.mxu0 %v476
      %v495 = vpop.f32.mrf.mxu0
      %v496 = vadd.f32 0.0, %v495
      %497 = vdwg.mxu0
      %498 = vst.msk [vmem:[%s436 + $0x4] sm:$0xff] %vm471, %v496
      %v499 = vld [vmem:[%s5] sm:$0xff]
      %v500 = vld [vmem:[%s5 + $0x8] sm:$0xff]
      %v501 = vld [vmem:[%s5 + $0x10] sm:$0xff]
      %v502 = vld [vmem:[%s5 + $0x18] sm:$0xff]
      %v503 = vld [vmem:[%s5 + $0x20] sm:$0xff]
      %v504 = vld [vmem:[%s5 + $0x28] sm:$0xff]
      %v505 = vld [vmem:[%s5 + $0x30] sm:$0x1]
      %v506 = vld [vmem:[%s298] sm:$0xff]
      %v507 = vld [vmem:[%s298 + $0x8] sm:$0xff]
      %vm508 = vcmask 400384
      %v510 = vsel %vm508, %v506, 0
      %v513 = vsel %vm508, %v507, 0
      %vm515 = vcmask 1040384
      %v517 = vsel %vm515, %v505, 0
      %519 = vmatpush.msra.mxu0 0.0
      %520 = vmatpush.msra.mxu0 0.0
      %521 = vmatpush.msra.mxu0 0.0
      %522 = vmatpush.msra.mxu0 0.0
      %523 = vmatpush.msra.mxu0 0.0
      %524 = vmatpush.msra.mxu0 0.0
      %525 = vmatpush.msra.mxu0 0.0
      %526 = vmatpush.msra.mxu0 0.0
      %527 = vmatpush.msra.mxu0 0.0
      %528 = vmatpush.msra.mxu0 %v517
      %529 = vmatpush.msra.mxu0 %v504
      %530 = vmatpush.msra.mxu0 %v503
      %531 = vmatpush.msra.mxu0 %v502
      %532 = vmatpush.msra.mxu0 %v501
      %533 = vmatpush.msra.mxu0 %v500
      %534 = vmatpush.msra.mxu0 %v499
      %535 = vmatmul.f32.gmra.mxu0 %v510
      %v536 = vpop.f32.mrf.mxu0
      %v537 = vadd.f32 0.0, %v536
      %538 = vmatmul.f32.gmra.mxu0 %v513
      %v539 = vpop.f32.mrf.mxu0
      %v540 = vadd.f32 0.0, %v539
      %541 = vdwg.mxu0
      %542 = vst.msk [vmem:[%s305 + $0xc] sm:$0xff] %vm471, %v537
      %543 = vst.msk [vmem:[%s305 + $0x14] sm:$0xff] %vm471, %v540
      %s544 = scalar_lea.vmem %s298, 16
      %v545 = vld [vmem:[%s544] sm:$0xff]
      %v546 = vld [vmem:[%s544 + $0x8] sm:$0xff]
      %v548 = vsel %vm508, %v545, 0
      %v551 = vsel %vm508, %v546, 0
      %553 = vmatpush.msra.mxu0 0.0
      %554 = vmatpush.msra.mxu0 0.0
      %555 = vmatpush.msra.mxu0 0.0
      %556 = vmatpush.msra.mxu0 0.0
      %557 = vmatpush.msra.mxu0 0.0
      %558 = vmatpush.msra.mxu0 0.0
      %559 = vmatpush.msra.mxu0 0.0
      %560 = vmatpush.msra.mxu0 0.0
      %561 = vmatpush.msra.mxu0 0.0
      %562 = vmatpush.msra.mxu0 %v517
      %563 = vmatpush.msra.mxu0 %v504
      %564 = vmatpush.msra.mxu0 %v503
      %565 = vmatpush.msra.mxu0 %v502
      %566 = vmatpush.msra.mxu0 %v501
      %567 = vmatpush.msra.mxu0 %v500
      %568 = vmatpush.msra.mxu0 %v499
      %569 = vmatmul.f32.gmra.mxu0 %v548
      %v570 = vpop.f32.mrf.mxu0
      %v571 = vadd.f32 0.0, %v570
      %572 = vmatmul.f32.gmra.mxu0 %v551
      %v573 = vpop.f32.mrf.mxu0
      %v574 = vadd.f32 0.0, %v573
      %575 = vdwg.mxu0
      %576 = vst.msk [vmem:[%s436 + $0xc] sm:$0xff] %vm471, %v571
      %577 = vst.msk [vmem:[%s436 + $0x14] sm:$0xff] %vm471, %v574
      %s578 = smul.u32 2, %s17
      %p579 = scmp.lt.s32.totalorder %s578, 3
      %s580 = scalar_select %p579, %s578, 3
      %s581 = smul.addr %s580, 4
      %s582 = smul.addr %s581, 8
      %s583 = scalar_lea.vmem %s6, %s582
      // Predicated region
      $region45: #{tpu_custom_call.1} parent=43 // pred_check
        %p584 = pneg %p176
      $region46: #{tpu_custom_call.1} parent=43 // pred_check_branch
        %586 = sbr.rel (%p584) target = $region48
      $region47: #{tpu_custom_call.1} parent=43 // pred_region
        %s587 = smul.u32 2, %s17
      $region48: #{tpu_custom_call.1} parent=43 // pred_fallthru
        _
    $region44: #{tpu_custom_call.1} parent=5 // pred_fallthru
      _
    %p588 = scmp.le.s32.totalorder 2, %s12
    // Predicated region
    $region49: #{tpu_custom_call.1} parent=5 // pred_check
      %p589 = pneg %p588
    $region50: #{tpu_custom_call.1} parent=5 // pred_check_branch
      %591 = sbr.rel (%p589) target = $region52
    $region51: #{tpu_custom_call.1} parent=5 // pred_region
      %s592 = ssub.s32 %s12, 2
      // Predicated region
      $region53: #{tpu_custom_call.1} parent=51 // pred_check
        %p593 = pneg %p182
      $region54: #{tpu_custom_call.1} parent=51 // pred_check_branch
        %595 = sbr.rel (%p593) target = $region56
      $region55: #{tpu_custom_call.1} parent=51 // pred_region
        %s596 = smul.u32 2, %s18
        %p597 = scmp.lt.s32.totalorder %s596, 3
        %s598 = scalar_select %p597, %s596, 3
        %s599 = smul.addr %s598, 4
        %s600 = smul.addr %s599, 8
        %s601 = scalar_lea.vmem %s6, %s600
      $region56: #{tpu_custom_call.1} parent=51 // pred_fallthru
        _
    $region52: #{tpu_custom_call.1} parent=5 // pred_fallthru
      _
  $region6: #{tpu_custom_call.1} parent=0 // loop_footer
    %s16 = sadd.s32 1, %s12
  $region7: #{tpu_custom_call.1} parent=0 // loop_footer_branch
    %11 = sbr.rel target = $region3
  $region8: #{tpu_custom_call.1} parent=0 // loop_exit
    _

</llo_original>
